<compile_context>
chip_gen: v6e
topology: v6e:2x2x1
jax: 0.10.0
libtpu: 0.0.40
codegen_flags: <defaults>
</compile_context>

<pallas_src>
import math
from functools import partial

import jax
import jax.numpy as jnp
import numpy as np
from jax import lax
from jax.experimental import pallas as pl
from jax.experimental.pallas import tpu as pltpu

# ---------------- small synthetic SigLIP config ------------------------------
CFG = dict(
    image_size=16,
    patch_size=8,
    num_channels=3,
    hidden_size=32,
    num_heads=4,
    intermediate_size=64,
    num_layers=2,
    layer_norm_eps=1e-6,
)
SCALES = (1, 2)  # args.scales -> pyramid of [1x, 2x] resolutions

VMEM_LIMIT = 48 * 1024 * 1024   # <= v7x 64 MiB physical, > scoped defaults
ROW_TILE_CAP = 512              # multiple of 16 (bf16 sublane packing)
COMPUTE_DTYPE = jnp.bfloat16    # MXU operand / inter-kernel slab dtype

_TRANS_B = (((1,), (1,)), ((), ()))  # contract last dims of both operands (A @ B^T)


# ---------------- tiling helpers ----------------------------------------------
def _row_tiles(M):
    """Return (row_tile, padded_M).  Small M -> one full-extent block (always a
    legal block shape); large M -> fixed 512-row tiles with a cdiv grid and
    zero-padded trailing partial tile (rows are independent in every kernel)."""
    if M <= ROW_TILE_CAP:
        return M, M
    tm = ROW_TILE_CAP
    return tm, int(pl.cdiv(M, tm)) * tm


def _pad_rows(x, m_pad):
    if x.shape[0] == m_pad:
        return x
    return jnp.pad(x, ((0, m_pad - x.shape[0]), (0, 0)))


# ---------------- Pallas kernels ----------------------------------------------
def _ln_matmul_kernel(x_ref, g_ref, beta_ref, w_ref, b_ref, o_ref, *, eps):
    """o = LayerNorm(x) @ W + b.  LN stats f32, matmul operands bf16, f32 acc."""
    x = x_ref[...].astype(jnp.float32)
    mean = jnp.mean(x, axis=-1, keepdims=True)
    xc = x - mean
    var = jnp.mean(xc * xc, axis=-1, keepdims=True)
    h = xc * lax.rsqrt(var + eps) * g_ref[...] + beta_ref[...]
    y = jnp.dot(h.astype(w_ref.dtype), w_ref[...],
                preferred_element_type=jnp.float32) + b_ref[...]
    o_ref[...] = y.astype(o_ref.dtype)


def _ln_mlp_kernel(x_ref, g_ref, beta_ref, w1_ref, b1_ref, w2_ref, b2_ref,
                   o_ref, *, eps):
    """Fused MLP block: o = x + GELU_tanh(LayerNorm(x) @ W1 + b1) @ W2 + b2.
    Keeps the (tm, I) GELU activations in registers/VMEM (no HBM round trip)."""
    x = x_ref[...].astype(jnp.float32)
    mean = jnp.mean(x, axis=-1, keepdims=True)
    xc = x - mean
    var = jnp.mean(xc * xc, axis=-1, keepdims=True)
    h = xc * lax.rsqrt(var + eps) * g_ref[...] + beta_ref[...]
    y = jnp.dot(h.astype(w1_ref.dtype), w1_ref[...],
                preferred_element_type=jnp.float32) + b1_ref[...]
    c = 0.7978845608028654  # sqrt(2/pi); SigLIP hidden_act = gelu_pytorch_tanh
    y = 0.5 * y * (1.0 + jnp.tanh(c * (y + 0.044715 * y * y * y)))
    z = jnp.dot(y.astype(w2_ref.dtype), w2_ref[...],
                preferred_element_type=jnp.float32) + b2_ref[...]
    o_ref[...] = (z + x).astype(o_ref.dtype)


def _matmul_bias_add_kernel(x_ref, w_ref, b_ref, r_ref, o_ref):
    """o = x @ W + b + r (patch embedding with fused positional add)."""
    y = jnp.dot(x_ref[...].astype(w_ref.dtype), w_ref[...],
                preferred_element_type=jnp.float32)
    o_ref[...] = (y + b_ref[...] + r_ref[...].astype(jnp.float32)).astype(o_ref.dtype)


def _layernorm_kernel(x_ref, g_ref, b_ref, o_ref, *, eps):
    x = x_ref[...].astype(jnp.float32)
    mean = jnp.mean(x, axis=-1, keepdims=True)
    xc = x - mean
    var = jnp.mean(xc * xc, axis=-1, keepdims=True)
    o_ref[...] = (xc * lax.rsqrt(var + eps) * g_ref[...]
                  + b_ref[...]).astype(o_ref.dtype)


def _attn_kernel(q_ref, k_ref, v_ref, res_ref, wo_ref, bo_ref, o_ref, acc_ref,
                 *, scale):
    """Grid = (batch, head).  softmax(q k^T) v for one head, projected through
    this head's (Dh, D) slice of W_o and accumulated into an (n, D) f32
    scratch; bias + residual added and stored (lane-dense) on the last head."""
    h = pl.program_id(1)

    @pl.when(h == 0)
    def _():
        acc_ref[...] = jnp.zeros_like(acc_ref)

    q = q_ref[0, 0]                              # (n, Dh) bf16
    k = k_ref[0, 0]
    v = v_ref[0, 0]
    s = lax.dot_general(q, k, _TRANS_B,
                        preferred_element_type=jnp.float32) * scale
    s = s - jnp.max(s, axis=-1, keepdims=True)
    p = jnp.exp(s)
    p = p / jnp.sum(p, axis=-1, keepdims=True)   # exact softmax (f32)
    ctx = jnp.dot(p.astype(v.dtype), v, preferred_element_type=jnp.float32)
    acc_ref[...] += jnp.dot(ctx.astype(wo_ref.dtype), wo_ref[0],
                            preferred_element_type=jnp.float32)

    @pl.when(h == pl.num_programs(1) - 1)
    def _():
        out = acc_ref[...] + bo_ref[...] + res_ref[0].astype(jnp.float32)
        o_ref[0] = out.astype(o_ref.dtype)


# ---------------- Pallas wrappers ---------------------------------------------
def _mparams():
    # On v7x, the independent grid axes could additionally be core-sharded;
    # "parallel" is the portable default across v5e / v6e / v7x.
    return pltpu.CompilerParams(dimension_semantics=("parallel",),
                                vmem_limit_bytes=VMEM_LIMIT)


def pallas_ln_matmul(x, gamma, beta, w, b, *, eps):
    M, K = x.shape
    N = w.shape[1]
    tm, m_pad = _row_tiles(M)
    xp = _pad_rows(x, m_pad)
    out = pl.pallas_call(
        partial(_ln_matmul_kernel, eps=eps),
        out_shape=jax.ShapeDtypeStruct((m_pad, N), COMPUTE_DTYPE),
        grid=(m_pad // tm,),
        in_specs=[
            pl.BlockSpec((tm, K), lambda i: (i, 0)),
            pl.BlockSpec((1, K), lambda i: (0, 0)),
            pl.BlockSpec((1, K), lambda i: (0, 0)),
            pl.BlockSpec((K, N), lambda i: (0, 0)),   # bf16 weight VMEM-resident
            pl.BlockSpec((1, N), lambda i: (0, 0)),
        ],
        out_specs=pl.BlockSpec((tm, N), lambda i: (i, 0)),
        compiler_params=_mparams(),
        cost_estimate=pl.CostEstimate(
            flops=2 * m_pad * K * N, transcendentals=0,
            bytes_accessed=2 * (m_pad * K + K * N + m_pad * N) + 4 * (2 * K + N)),
    )(xp, gamma.reshape(1, K), beta.reshape(1, K), w, b.reshape(1, N))
    return out[:M]


def pallas_ln_mlp(x, gamma, beta, w1, b1, w2, b2, *, eps):
    M, D = x.shape
    I = w1.shape[1]
    tm, m_pad = _row_tiles(M)
    xp = _pad_rows(x, m_pad)
    out = pl.pallas_call(
        partial(_ln_mlp_kernel, eps=eps),
        out_shape=jax.ShapeDtypeStruct((m_pad, D), COMPUTE_DTYPE),
        grid=(m_pad // tm,),
        in_specs=[
            pl.BlockSpec((tm, D), lambda i: (i, 0)),
            pl.BlockSpec((1, D), lambda i: (0, 0)),
            pl.BlockSpec((1, D), lambda i: (0, 0)),
            pl.BlockSpec((D, I), lambda i: (0, 0)),   # fc1 resident (bf16)
            pl.BlockSpec((1, I), lambda i: (0, 0)),
            pl.BlockSpec((I, D), lambda i: (0, 0)),   # fc2 resident (bf16)
            pl.BlockSpec((1, D), lambda i: (0, 0)),
        ],
        out_specs=pl.BlockSpec((tm, D), lambda i: (i, 0)),
        compiler_params=_mparams(),
        cost_estimate=pl.CostEstimate(
            flops=4 * m_pad * D * I, transcendentals=m_pad * I,
            bytes_accessed=2 * (2 * m_pad * D + 2 * D * I)
                           + 4 * (2 * D + I + D)),
    )(xp, gamma.reshape(1, D), beta.reshape(1, D),
      w1, b1.reshape(1, I), w2, b2.reshape(1, D))
    return out[:M]


def pallas_matmul_bias_add(x, w, b, r):
    """out = x @ w + b + r  (patch embedding; r = positional embedding slab)."""
    M, K = x.shape
    N = w.shape[1]
    tm, m_pad = _row_tiles(M)
    xp = _pad_rows(x, m_pad)
    rp = _pad_rows(r, m_pad)
    out = pl.pallas_call(
        _matmul_bias_add_kernel,
        out_shape=jax.ShapeDtypeStruct((m_pad, N), COMPUTE_DTYPE),
        grid=(m_pad // tm,),
        in_specs=[
            pl.BlockSpec((tm, K), lambda i: (i, 0)),
            pl.BlockSpec((K, N), lambda i: (0, 0)),
            pl.BlockSpec((1, N), lambda i: (0, 0)),
            pl.BlockSpec((tm, N), lambda i: (i, 0)),
        ],
        out_specs=pl.BlockSpec((tm, N), lambda i: (i, 0)),
        compiler_params=_mparams(),
        cost_estimate=pl.CostEstimate(
            flops=2 * m_pad * K * N, transcendentals=0,
            bytes_accessed=2 * (m_pad * K + K * N + m_pad * N)
                           + 4 * (m_pad * N + N)),
    )(xp, w, b.reshape(1, N), rp)
    return out[:M]


def pallas_layernorm(x, g, b, eps, out_dtype=jnp.float32):
    M, D = x.shape
    tm, m_pad = _row_tiles(M)
    xp = _pad_rows(x, m_pad)
    out = pl.pallas_call(
        partial(_layernorm_kernel, eps=eps),
        out_shape=jax.ShapeDtypeStruct((m_pad, D), out_dtype),
        grid=(m_pad // tm,),
        in_specs=[
            pl.BlockSpec((tm, D), lambda i: (i, 0)),
            pl.BlockSpec((1, D), lambda i: (0, 0)),
            pl.BlockSpec((1, D), lambda i: (0, 0)),
        ],
        out_specs=pl.BlockSpec((tm, D), lambda i: (i, 0)),
        compiler_params=_mparams(),
        cost_estimate=pl.CostEstimate(
            flops=8 * m_pad * D, transcendentals=0,
            bytes_accessed=2 * m_pad * D + 4 * (m_pad * D + 2 * D)),
    )(xp, g.reshape(1, D), b.reshape(1, D))
    return out[:M]


def pallas_attention(qkv, x_res, wo, bo, num_heads, scale):
    """qkv: [B*n, 3D] fused-projection output; x_res: [B, n, D] residual.
    Grid (B, H); per-head out-projection contributions are accumulated into an
    (n, D) f32 VMEM scratch, written once per batch item (lane-dense)."""
    B, n, D = x_res.shape
    H = num_heads
    Dh = D // H
    # Head split is a zero-risk XLA relayout outside the kernel; the attention
    # kernel then streams one (n, Dh) head block per grid step.
    qkv5 = qkv.reshape(B, n, 3, H, Dh).transpose(2, 0, 3, 1, 4)  # (3, B, H, n, Dh)
    q, k, v = qkv5[0], qkv5[1], qkv5[2]
    wo_h = wo.reshape(H, Dh, D)

    head_spec = pl.BlockSpec((1, 1, n, Dh), lambda b, h: (b, h, 0, 0))
    x_spec = pl.BlockSpec((1, n, D), lambda b, h: (b, 0, 0))

    flops = B * H * (4 * n * n * Dh + 2 * n * Dh * D)
    bytes_accessed = 2 * (3 * B * H * n * Dh + 2 * B * n * D + H * Dh * D) + 4 * D
    return pl.pallas_call(
        partial(_attn_kernel, scale=scale),
        out_shape=jax.ShapeDtypeStruct((B, n, D), COMPUTE_DTYPE),
        grid=(B, H),
        in_specs=[
            head_spec, head_spec, head_spec,
            x_spec,
            pl.BlockSpec((1, Dh, D), lambda b, h: (h, 0, 0)),
            pl.BlockSpec((1, D), lambda b, h: (0, 0)),
        ],
        out_specs=x_spec,
        scratch_shapes=[pltpu.VMEM((n, D), jnp.float32)],
        compiler_params=pltpu.CompilerParams(
            dimension_semantics=("parallel", "arbitrary"),
            vmem_limit_bytes=VMEM_LIMIT),
        cost_estimate=pl.CostEstimate(flops=flops,
                                      transcendentals=B * H * n * n,
                                      bytes_accessed=bytes_accessed),
    )(q, k, v, x_res, wo_h, bo.reshape(1, D))


# ---------------- parameter init (deterministic, synthetic) -------------------
def _init_linear(key, fan_in, fan_out):
    kw, kb = jax.random.split(key)
    w = (0.02 * jax.random.normal(kw, (fan_in, fan_out), jnp.float32)
         ).astype(COMPUTE_DTYPE)                      # weights stored bf16
    b = 0.02 * jax.random.normal(kb, (fan_out,), jnp.float32)
    return w, b


def init_params(key, cfg):
    D = cfg["hidden_size"]
    C = cfg["num_channels"]
    P = cfg["patch_size"]
    I = cfg["intermediate_size"]
    n_patches = (cfg["image_size"] // P) ** 2
    keys = jax.random.split(key, 2 + cfg["num_layers"])
    params = {}
    # patch embedding conv (kernel=stride=patch) expressed as im2col matmul
    params["patch_w"], params["patch_b"] = _init_linear(keys[0], C * P * P, D)
    params["pos_emb"] = 0.02 * jax.random.normal(keys[1], (n_patches, D), jnp.float32)
    layers = []
    for li in range(cfg["num_layers"]):
        lk = jax.random.split(keys[2 + li], 6)
        lp = {}
        lp["ln1_g"] = jnp.ones((D,), jnp.float32)
        lp["ln1_b"] = jnp.zeros((D,), jnp.float32)
        q_w, q_b = _init_linear(lk[0], D, D)
        k_w, k_b = _init_linear(lk[1], D, D)
        v_w, v_b = _init_linear(lk[2], D, D)
        lp["qkv_w"] = jnp.concatenate([q_w, k_w, v_w], axis=1)   # [D, 3D] bf16
        lp["qkv_b"] = jnp.concatenate([q_b, k_b, v_b])           # [3D] f32
        lp["o_w"], lp["o_b"] = _init_linear(lk[3], D, D)
        lp["ln2_g"] = jnp.ones((D,), jnp.float32)
        lp["ln2_b"] = jnp.zeros((D,), jnp.float32)
        lp["fc1_w"], lp["fc1_b"] = _init_linear(lk[4], D, I)
        lp["fc2_w"], lp["fc2_b"] = _init_linear(lk[5], I, D)
        layers.append(lp)
    params["layers"] = layers
    params["post_ln_g"] = jnp.ones((D,), jnp.float32)
    params["post_ln_b"] = jnp.zeros((D,), jnp.float32)
    return params


# ---------------- SiglipVisionTransformer (orchestration over Pallas) ---------
def encoder_layer(lp, x, cfg):
    B, n, D = x.shape
    H = cfg["num_heads"]
    eps = cfg["layer_norm_eps"]
    scale = (D // H) ** -0.5

    x2d = x.reshape(B * n, D)
    # Attention block: LN1 + fused QKV matmul, then per-head attention with
    # accumulated out-projection + residual.
    qkv = pallas_ln_matmul(x2d, lp["ln1_g"], lp["ln1_b"],
                           lp["qkv_w"], lp["qkv_b"], eps=eps)
    x = pallas_attention(qkv, x, lp["o_w"], lp["o_b"], H, scale)

    # MLP block, fully fused: LN2 + FC1 + GELU + FC2 + residual in one kernel.
    x2d = pallas_ln_mlp(x.reshape(B * n, D), lp["ln2_g"], lp["ln2_b"],
                        lp["fc1_w"], lp["fc1_b"], lp["fc2_w"], lp["fc2_b"],
                        eps=eps)
    return x2d.reshape(B, n, D)


def vision_transformer(params, pixel_values, cfg):
    # pixel_values: NCHW [B, C, H, W]
    B, C, Himg, Wimg = pixel_values.shape
    P = cfg["patch_size"]
    D = cfg["hidden_size"]
    gh, gw = Himg // P, Wimg // P
    n = gh * gw
    # im2col: patch order row-major (gh, gw); per-patch flatten order (C, ph, pw)
    # matches torch Conv2d weight.reshape(D, C*P*P)
    patches = (
        pixel_values.reshape(B, C, gh, P, gw, P)
        .transpose(0, 2, 4, 1, 3, 5)
        .reshape(B * n, C * P * P)
    ).astype(COMPUTE_DTYPE)
    pos_full = jnp.tile(params["pos_emb"], (B, 1))       # (B*n, D) f32
    x = pallas_matmul_bias_add(patches, params["patch_w"], params["patch_b"],
                               pos_full)
    x = x.reshape(B, n, D)
    for lp in params["layers"]:
        x = encoder_layer(lp, x, cfg)
    # TODO(synk): select_layer intermediate-hidden-state selection simplified to
    # final encoder output + post-layernorm (feature_select('patch') is identity).
    x = pallas_layernorm(x.reshape(B * n, D), params["post_ln_g"],
                         params["post_ln_b"], cfg["layer_norm_eps"],
                         out_dtype=jnp.float32)
    return x.reshape(B, n, D)


# ---------------- pyramid glue (plain JAX) -------------------------------------
def _cubic_weight(x, a=-0.75):
    ax = abs(x)
    if ax <= 1.0:
        return (a + 2.0) * ax ** 3 - (a + 3.0) * ax ** 2 + 1.0
    if ax < 2.0:
        return a * ax ** 3 - 5.0 * a * ax ** 2 + 8.0 * a * ax - 4.0 * a
    return 0.0


def _bicubic_matrix(in_size, out_size):
    # PyTorch F.interpolate(mode='bicubic', align_corners=False): a=-0.75,
    # half-pixel centers, clamped borders.
    M = np.zeros((out_size, in_size), dtype=np.float32)
    scale = in_size / out_size
    for i in range(out_size):
        src = (i + 0.5) * scale - 0.5
        x0 = int(np.floor(src))
        t = src - x0
        for k in range(-1, 3):
            idx = min(max(x0 + k, 0), in_size - 1)
            M[i, idx] += _cubic_weight(k - t)
    return jnp.asarray(M)


def bicubic_resize(x, out_size):
    # x: [B, C, H, W] float32 -> [B, C, out_size, out_size]
    _, _, H, W = x.shape
    Mh = _bicubic_matrix(H, out_size)
    Mw = _bicubic_matrix(W, out_size)
    y = jnp.einsum("ih,bchw->bciw", Mh, x)
    return jnp.einsum("jw,bciw->bcij", Mw, y)


def area_resize(x, t):
    # F.interpolate(mode='area') to (t, t) when H, W are multiples of t == avg pool
    b, c, H, W = x.shape
    kh, kw = H // t, W // t
    return x.reshape(b, c, t, kh, t, kw).mean(axis=(3, 5))


def split_chessboard(x, num_split):
    _, _, H, W = x.shape
    h, w = H // num_split, W // num_split
    parts = [
        x[:, :, i * h:(i + 1) * h, j * w:(j + 1) * w]
        for i in range(num_split)
        for j in range(num_split)
    ]
    return jnp.concatenate(parts, axis=0)


def merge_chessboard(x, num_split):
    B = x.shape[0]
    b = B // (num_split ** 2)
    rows = []
    for i in range(num_split):
        cols = [x[(i * num_split + j) * b:(i * num_split + j + 1) * b]
                for j in range(num_split)]
        rows.append(jnp.concatenate(cols, axis=-1))
    return jnp.concatenate(rows, axis=-2)


# ---------------- SiglipVisionTower.forward (clip_smoe=False path) ------------
def siglip_vision_tower_forward(params, images, cfg=CFG, scales=SCALES):
    input_size = images.shape[3]
    img_sizes = [int(input_size * s) for s in scales]
    num_splits = [math.ceil(size / input_size) for size in img_sizes]

    pyramids = [images]
    for i, (size, ns) in enumerate(zip(img_sizes, num_splits)):
        if i > 0:
            x = bicubic_resize(images.astype(jnp.float32), size).astype(images.dtype)
            x = split_chessboard(x, num_split=ns)
            pyramids.append(x)

    # Run all pyramid levels through the encoder in ONE batched call so every
    # matmul sees the full token count (amortizes launches + weight DMA).
    same_spatial = all(p.shape[1:] == pyramids[0].shape[1:] for p in pyramids)
    if same_spatial:
        batch_sizes = [p.shape[0] for p in pyramids]
        all_out = vision_transformer(params, jnp.concatenate(pyramids, axis=0), cfg)
        outs = []
        off = 0
        for bs in batch_sizes:
            outs.append(all_out[off:off + bs])
            off += bs
    else:  # non-integer scales would give differing tile sizes; fall back
        outs = [vision_transformer(params, p, cfg) for p in pyramids]

    feats = []
    for i, (out_x, ns) in enumerate(zip(outs, num_splits)):
        if i > 0:
            h = int(out_x.shape[1] ** 0.5)
            b, _, c = out_x.shape
            out_x = out_x.reshape(b, h, h, c).transpose(0, 3, 1, 2)  # b (h w) c -> b c h w
            out_x = merge_chessboard(out_x, num_split=ns)
            target = int(feats[0].shape[1] ** 0.5)
            out_x = area_resize(out_x.astype(jnp.float32), target).astype(images.dtype)
            out_x = out_x.transpose(0, 2, 3, 1).reshape(out_x.shape[0], target * target, c)
        feats.append(out_x)

    image_features = jnp.concatenate(feats, axis=-1)
    return image_features, None, None


# ---------------- main ----------------------------------------------------------
if __name__ == "__main__":
    key = jax.random.PRNGKey(0)
    pkey, xkey = jax.random.split(key)
    params = init_params(pkey, CFG)

    images = jax.random.normal(
        xkey, (2, CFG["num_channels"], CFG["image_size"], CFG["image_size"]),
        jnp.float32,
    )

    forward = jax.jit(lambda p, im: siglip_vision_tower_forward(p, im))
    feats, aux_loss, id_experts = forward(params, images)
    feats = jax.block_until_ready(feats)

    n_base = (CFG["image_size"] // CFG["patch_size"]) ** 2
    assert feats.shape == (2, n_base, CFG["hidden_size"] * len(SCALES)), feats.shape
    assert feats.dtype == jnp.float32
    assert bool(jnp.all(jnp.isfinite(feats)))
    print("KERNEL_OK")
</pallas_src>

<mosaic_0001>
module attributes {stable_mosaic.version = 11 : i64} {
  func.func @_matmul_bias_add_kernel(%arg0: i32, %arg1: memref<40x192xbf16, #tpu.memory_space<vmem>>, %arg2: memref<192x32xbf16, #tpu.memory_space<vmem>>, %arg3: memref<1x32xf32, #tpu.memory_space<vmem>>, %arg4: memref<40x32xf32, #tpu.memory_space<vmem>>, %arg5: memref<40x32xbf16, #tpu.memory_space<vmem>>) attributes {dimension_semantics = [#tpu.dimension_semantics<parallel>], iteration_bounds = array<i64: 1>, scalar_prefetch = 0 : i64, scratch_operands = 0 : i64, tpu.core_type = #tpu.core_type<tc>, window_params = [{transform_indices = @transform_0, window_bounds = array<i64: 40, 192>}, {pipeline_mode = #tpu.pipeline_mode<synchronous>, transform_indices = @transform_1, window_bounds = array<i64: 192, 32>}, {pipeline_mode = #tpu.pipeline_mode<synchronous>, transform_indices = @transform_2, window_bounds = array<i64: 1, 32>}, {transform_indices = @transform_3, window_bounds = array<i64: 40, 32>}, {transform_indices = @transform_4, window_bounds = array<i64: 40, 32>}]} {
    %c0 = arith.constant 0 : index
    %c0_0 = arith.constant 0 : index
    %0 = vector.load %arg1[%c0, %c0_0] : memref<40x192xbf16, #tpu.memory_space<vmem>>, vector<40x192xbf16>
    %c0_1 = arith.constant 0 : index
    %c0_2 = arith.constant 0 : index
    %1 = vector.load %arg2[%c0_1, %c0_2] : memref<192x32xbf16, #tpu.memory_space<vmem>>, vector<192x32xbf16>
    %cst = arith.constant dense<0.000000e+00> : vector<40x32xf32>
    %2 = tpu.matmul %0, %1, %cst {dimension_numbers = #tpu.dot_dimension_numbers<[1], [0], [0], [1], [0, 0, 1, 1], [], []>} : vector<40x192xbf16>, vector<192x32xbf16>, vector<40x32xf32> -> vector<40x32xf32>
    %c0_3 = arith.constant 0 : index
    %c0_4 = arith.constant 0 : index
    %3 = vector.load %arg3[%c0_3, %c0_4] : memref<1x32xf32, #tpu.memory_space<vmem>>, vector<1x32xf32>
    %4 = vector.broadcast %3 : vector<1x32xf32> to vector<40x32xf32>
    %5 = arith.addf %2, %4 : vector<40x32xf32>
    %c0_5 = arith.constant 0 : index
    %c0_6 = arith.constant 0 : index
    %6 = vector.load %arg4[%c0_5, %c0_6] : memref<40x32xf32, #tpu.memory_space<vmem>>, vector<40x32xf32>
    %7 = arith.addf %5, %6 : vector<40x32xf32>
    %8 = arith.truncf %7 : vector<40x32xf32> to vector<40x32xbf16>
    %c0_7 = arith.constant 0 : index
    %c0_8 = arith.constant 0 : index
    %9 = vector.load %arg5[%c0_7, %c0_8] : memref<40x32xbf16, #tpu.memory_space<vmem>>, vector<40x32xbf16>
    tpu.vector_store %arg5[%c0_7, %c0_8], %8 {strides = array<i32>} : memref<40x32xbf16, #tpu.memory_space<vmem>>, vector<40x32xbf16>,
    return
  }
  func.func @transform_0(%arg0: i32) -> (i32, i32) {
    %c0_i32 = arith.constant 0 : i32
    %c0_i32_0 = arith.constant 0 : i32
    return %arg0, %c0_i32 : i32, i32
  }
  func.func @transform_1(%arg0: i32) -> (i32, i32) {
    %c0_i32 = arith.constant 0 : i32
    %c0_i32_0 = arith.constant 0 : i32
    %c0_i32_1 = arith.constant 0 : i32
    return %c0_i32, %c0_i32_0 : i32, i32
  }
  func.func @transform_2(%arg0: i32) -> (i32, i32) {
    %c0_i32 = arith.constant 0 : i32
    %c0_i32_0 = arith.constant 0 : i32
    %c0_i32_1 = arith.constant 0 : i32
    return %c0_i32, %c0_i32_0 : i32, i32
  }
  func.func @transform_3(%arg0: i32) -> (i32, i32) {
    %c0_i32 = arith.constant 0 : i32
    %c0_i32_0 = arith.constant 0 : i32
    return %arg0, %c0_i32 : i32, i32
  }
  func.func @transform_4(%arg0: i32) -> (i32, i32) {
    %c0_i32 = arith.constant 0 : i32
    %c0_i32_0 = arith.constant 0 : i32
    return %arg0, %c0_i32 : i32, i32
  }
}

module attributes {stable_mosaic.version = 11 : i64} {
  func.func @_ln_matmul_kernel(%arg0: i32, %arg1: memref<40x32xbf16, #tpu.memory_space<vmem>>, %arg2: memref<1x32xf32, #tpu.memory_space<vmem>>, %arg3: memref<1x32xf32, #tpu.memory_space<vmem>>, %arg4: memref<32x96xbf16, #tpu.memory_space<vmem>>, %arg5: memref<1x96xf32, #tpu.memory_space<vmem>>, %arg6: memref<40x96xbf16, #tpu.memory_space<vmem>>) attributes {dimension_semantics = [#tpu.dimension_semantics<parallel>], iteration_bounds = array<i64: 1>, scalar_prefetch = 0 : i64, scratch_operands = 0 : i64, tpu.core_type = #tpu.core_type<tc>, window_params = [{transform_indices = @transform_0, window_bounds = array<i64: 40, 32>}, {pipeline_mode = #tpu.pipeline_mode<synchronous>, transform_indices = @transform_1, window_bounds = array<i64: 1, 32>}, {pipeline_mode = #tpu.pipeline_mode<synchronous>, transform_indices = @transform_2, window_bounds = array<i64: 1, 32>}, {pipeline_mode = #tpu.pipeline_mode<synchronous>, transform_indices = @transform_3, window_bounds = array<i64: 32, 96>}, {pipeline_mode = #tpu.pipeline_mode<synchronous>, transform_indices = @transform_4, window_bounds = array<i64: 1, 96>}, {transform_indices = @transform_5, window_bounds = array<i64: 40, 96>}]} {
    %c0 = arith.constant 0 : index
    %c0_0 = arith.constant 0 : index
    %0 = vector.load %arg1[%c0, %c0_0] : memref<40x32xbf16, #tpu.memory_space<vmem>>, vector<40x32xbf16>
    %1 = arith.extf %0 : vector<40x32xbf16> to vector<40x32xf32>
    %cst = arith.constant dense<0.000000e+00> : vector<40xf32>
    %2 = vector.multi_reduction <add>, %1, %cst [1] : vector<40x32xf32> to vector<40xf32>
    %3 = vector.shape_cast %2 : vector<40xf32> to vector<40x1xf32>
    %cst_1 = arith.constant 3.200000e+01 : f32
    %4 = vector.broadcast %cst_1 : f32 to vector<40x1xf32>
    %5 = arith.divf %3, %4 : vector<40x1xf32>
    %6 = vector.broadcast %5 : vector<40x1xf32> to vector<40x32xf32>
    %7 = arith.subf %1, %6 : vector<40x32xf32>
    %8 = arith.mulf %7, %7 : vector<40x32xf32>
    %cst_2 = arith.constant dense<0.000000e+00> : vector<40xf32>
    %9 = vector.multi_reduction <add>, %8, %cst_2 [1] : vector<40x32xf32> to vector<40xf32>
    %10 = vector.shape_cast %9 : vector<40xf32> to vector<40x1xf32>
    %cst_3 = arith.constant 3.200000e+01 : f32
    %11 = vector.broadcast %cst_3 : f32 to vector<40x1xf32>
    %12 = arith.divf %10, %11 : vector<40x1xf32>
    %cst_4 = arith.constant 9.99999997E-7 : f32
    %13 = vector.broadcast %cst_4 : f32 to vector<40x1xf32>
    %14 = arith.addf %12, %13 : vector<40x1xf32>
    %15 = math.rsqrt %14 : vector<40x1xf32>
    %16 = vector.broadcast %15 : vector<40x1xf32> to vector<40x32xf32>
    %17 = arith.mulf %7, %16 : vector<40x32xf32>
    %c0_5 = arith.constant 0 : index
    %c0_6 = arith.constant 0 : index
    %18 = vector.load %arg2[%c0_5, %c0_6] : memref<1x32xf32, #tpu.memory_space<vmem>>, vector<1x32xf32>
    %19 = vector.broadcast %18 : vector<1x32xf32> to vector<40x32xf32>
    %20 = arith.mulf %17, %19 : vector<40x32xf32>
    %c0_7 = arith.constant 0 : index
    %c0_8 = arith.constant 0 : index
    %21 = vector.load %arg3[%c0_7, %c0_8] : memref<1x32xf32, #tpu.memory_space<vmem>>, vector<1x32xf32>
    %22 = vector.broadcast %21 : vector<1x32xf32> to vector<40x32xf32>
    %23 = arith.addf %20, %22 : vector<40x32xf32>
    %24 = arith.truncf %23 : vector<40x32xf32> to vector<40x32xbf16>
    %c0_9 = arith.constant 0 : index
    %c0_10 = arith.constant 0 : index
    %25 = vector.load %arg4[%c0_9, %c0_10] : memref<32x96xbf16, #tpu.memory_space<vmem>>, vector<32x96xbf16>
    %cst_11 = arith.constant dense<0.000000e+00> : vector<40x96xf32>
    %26 = tpu.matmul %24, %25, %cst_11 {dimension_numbers = #tpu.dot_dimension_numbers<[1], [0], [0], [1], [0, 0, 1, 1], [], []>} : vector<40x32xbf16>, vector<32x96xbf16>, vector<40x96xf32> -> vector<40x96xf32>
    %c0_12 = arith.constant 0 : index
    %c0_13 = arith.constant 0 : index
    %27 = vector.load %arg5[%c0_12, %c0_13] : memref<1x96xf32, #tpu.memory_space<vmem>>, vector<1x96xf32>
    %28 = vector.broadcast %27 : vector<1x96xf32> to vector<40x96xf32>
    %29 = arith.addf %26, %28 : vector<40x96xf32>
    %30 = arith.truncf %29 : vector<40x96xf32> to vector<40x96xbf16>
    %c0_14 = arith.constant 0 : index
    %c0_15 = arith.constant 0 : index
    %31 = vector.load %arg6[%c0_14, %c0_15] : memref<40x96xbf16, #tpu.memory_space<vmem>>, vector<40x96xbf16>
    tpu.vector_store %arg6[%c0_14, %c0_15], %30 {strides = array<i32>} : memref<40x96xbf16, #tpu.memory_space<vmem>>, vector<40x96xbf16>,
    return
  }
  func.func @transform_0(%arg0: i32) -> (i32, i32) {
    %c0_i32 = arith.constant 0 : i32
    %c0_i32_0 = arith.constant 0 : i32
    return %arg0, %c0_i32 : i32, i32
  }
  func.func @transform_1(%arg0: i32) -> (i32, i32) {
    %c0_i32 = arith.constant 0 : i32
    %c0_i32_0 = arith.constant 0 : i32
    %c0_i32_1 = arith.constant 0 : i32
    return %c0_i32, %c0_i32_0 : i32, i32
  }
  func.func @transform_2(%arg0: i32) -> (i32, i32) {
    %c0_i32 = arith.constant 0 : i32
    %c0_i32_0 = arith.constant 0 : i32
    %c0_i32_1 = arith.constant 0 : i32
    return %c0_i32, %c0_i32_0 : i32, i32
  }
  func.func @transform_3(%arg0: i32) -> (i32, i32) {
    %c0_i32 = arith.constant 0 : i32
    %c0_i32_0 = arith.constant 0 : i32
    %c0_i32_1 = arith.constant 0 : i32
    return %c0_i32, %c0_i32_0 : i32, i32
  }
  func.func @transform_4(%arg0: i32) -> (i32, i32) {
    %c0_i32 = arith.constant 0 : i32
    %c0_i32_0 = arith.constant 0 : i32
    %c0_i32_1 = arith.constant 0 : i32
    return %c0_i32, %c0_i32_0 : i32, i32
  }
  func.func @transform_5(%arg0: i32) -> (i32, i32) {
    %c0_i32 = arith.constant 0 : i32
    %c0_i32_0 = arith.constant 0 : i32
    return %arg0, %c0_i32 : i32, i32
  }
}

module attributes {stable_mosaic.version = 11 : i64} {
  func.func @_ln_mlp_kernel(%arg0: i32, %arg1: memref<40x32xbf16, #tpu.memory_space<vmem>>, %arg2: memref<1x32xf32, #tpu.memory_space<vmem>>, %arg3: memref<1x32xf32, #tpu.memory_space<vmem>>, %arg4: memref<32x64xbf16, #tpu.memory_space<vmem>>, %arg5: memref<1x64xf32, #tpu.memory_space<vmem>>, %arg6: memref<64x32xbf16, #tpu.memory_space<vmem>>, %arg7: memref<1x32xf32, #tpu.memory_space<vmem>>, %arg8: memref<40x32xbf16, #tpu.memory_space<vmem>>) attributes {dimension_semantics = [#tpu.dimension_semantics<parallel>], iteration_bounds = array<i64: 1>, scalar_prefetch = 0 : i64, scratch_operands = 0 : i64, tpu.core_type = #tpu.core_type<tc>, window_params = [{transform_indices = @transform_0, window_bounds = array<i64: 40, 32>}, {pipeline_mode = #tpu.pipeline_mode<synchronous>, transform_indices = @transform_1, window_bounds = array<i64: 1, 32>}, {pipeline_mode = #tpu.pipeline_mode<synchronous>, transform_indices = @transform_2, window_bounds = array<i64: 1, 32>}, {pipeline_mode = #tpu.pipeline_mode<synchronous>, transform_indices = @transform_3, window_bounds = array<i64: 32, 64>}, {pipeline_mode = #tpu.pipeline_mode<synchronous>, transform_indices = @transform_4, window_bounds = array<i64: 1, 64>}, {pipeline_mode = #tpu.pipeline_mode<synchronous>, transform_indices = @transform_5, window_bounds = array<i64: 64, 32>}, {pipeline_mode = #tpu.pipeline_mode<synchronous>, transform_indices = @transform_6, window_bounds = array<i64: 1, 32>}, {transform_indices = @transform_7, window_bounds = array<i64: 40, 32>}]} {
    %c0 = arith.constant 0 : index
    %c0_0 = arith.constant 0 : index
    %0 = vector.load %arg1[%c0, %c0_0] : memref<40x32xbf16, #tpu.memory_space<vmem>>, vector<40x32xbf16>
    %1 = arith.extf %0 : vector<40x32xbf16> to vector<40x32xf32>
    %cst = arith.constant dense<0.000000e+00> : vector<40xf32>
    %2 = vector.multi_reduction <add>, %1, %cst [1] : vector<40x32xf32> to vector<40xf32>
    %3 = vector.shape_cast %2 : vector<40xf32> to vector<40x1xf32>
    %cst_1 = arith.constant 3.200000e+01 : f32
    %4 = vector.broadcast %cst_1 : f32 to vector<40x1xf32>
    %5 = arith.divf %3, %4 : vector<40x1xf32>
    %6 = vector.broadcast %5 : vector<40x1xf32> to vector<40x32xf32>
    %7 = arith.subf %1, %6 : vector<40x32xf32>
    %8 = arith.mulf %7, %7 : vector<40x32xf32>
    %cst_2 = arith.constant dense<0.000000e+00> : vector<40xf32>
    %9 = vector.multi_reduction <add>, %8, %cst_2 [1] : vector<40x32xf32> to vector<40xf32>
    %10 = vector.shape_cast %9 : vector<40xf32> to vector<40x1xf32>
    %cst_3 = arith.constant 3.200000e+01 : f32
    %11 = vector.broadcast %cst_3 : f32 to vector<40x1xf32>
    %12 = arith.divf %10, %11 : vector<40x1xf32>
    %cst_4 = arith.constant 9.99999997E-7 : f32
    %13 = vector.broadcast %cst_4 : f32 to vector<40x1xf32>
    %14 = arith.addf %12, %13 : vector<40x1xf32>
    %15 = math.rsqrt %14 : vector<40x1xf32>
    %16 = vector.broadcast %15 : vector<40x1xf32> to vector<40x32xf32>
    %17 = arith.mulf %7, %16 : vector<40x32xf32>
    %c0_5 = arith.constant 0 : index
    %c0_6 = arith.constant 0 : index
    %18 = vector.load %arg2[%c0_5, %c0_6] : memref<1x32xf32, #tpu.memory_space<vmem>>, vector<1x32xf32>
    %19 = vector.broadcast %18 : vector<1x32xf32> to vector<40x32xf32>
    %20 = arith.mulf %17, %19 : vector<40x32xf32>
    %c0_7 = arith.constant 0 : index
    %c0_8 = arith.constant 0 : index
    %21 = vector.load %arg3[%c0_7, %c0_8] : memref<1x32xf32, #tpu.memory_space<vmem>>, vector<1x32xf32>
    %22 = vector.broadcast %21 : vector<1x32xf32> to vector<40x32xf32>
    %23 = arith.addf %20, %22 : vector<40x32xf32>
    %24 = arith.truncf %23 : vector<40x32xf32> to vector<40x32xbf16>
    %c0_9 = arith.constant 0 : index
    %c0_10 = arith.constant 0 : index
    %25 = vector.load %arg4[%c0_9, %c0_10] : memref<32x64xbf16, #tpu.memory_space<vmem>>, vector<32x64xbf16>
    %cst_11 = arith.constant dense<0.000000e+00> : vector<40x64xf32>
    %26 = tpu.matmul %24, %25, %cst_11 {dimension_numbers = #tpu.dot_dimension_numbers<[1], [0], [0], [1], [0, 0, 1, 1], [], []>} : vector<40x32xbf16>, vector<32x64xbf16>, vector<40x64xf32> -> vector<40x64xf32>
    %c0_12 = arith.constant 0 : index
    %c0_13 = arith.constant 0 : index
    %27 = vector.load %arg5[%c0_12, %c0_13] : memref<1x64xf32, #tpu.memory_space<vmem>>, vector<1x64xf32>
    %28 = vector.broadcast %27 : vector<1x64xf32> to vector<40x64xf32>
    %29 = arith.addf %26, %28 : vector<40x64xf32>
    %cst_14 = arith.constant 5.000000e-01 : f32
    %30 = vector.broadcast %cst_14 : f32 to vector<40x64xf32>
    %31 = arith.mulf %30, %29 : vector<40x64xf32>
    %cst_15 = arith.constant 4.471500e-02 : f32
    %32 = vector.broadcast %cst_15 : f32 to vector<40x64xf32>
    %33 = arith.mulf %32, %29 : vector<40x64xf32>
    %34 = arith.mulf %33, %29 : vector<40x64xf32>
    %35 = arith.mulf %34, %29 : vector<40x64xf32>
    %36 = arith.addf %29, %35 : vector<40x64xf32>
    %cst_16 = arith.constant 0.797884583 : f32
    %37 = vector.broadcast %cst_16 : f32 to vector<40x64xf32>
    %38 = arith.mulf %37, %36 : vector<40x64xf32>
    %39 = math.tanh %38 : vector<40x64xf32>
    %cst_17 = arith.constant 1.000000e+00 : f32
    %40 = vector.broadcast %cst_17 : f32 to vector<40x64xf32>
    %41 = arith.addf %40, %39 : vector<40x64xf32>
    %42 = arith.mulf %31, %41 : vector<40x64xf32>
    %43 = arith.truncf %42 : vector<40x64xf32> to vector<40x64xbf16>
    %c0_18 = arith.constant 0 : index
    %c0_19 = arith.constant 0 : index
    %44 = vector.load %arg6[%c0_18, %c0_19] : memref<64x32xbf16, #tpu.memory_space<vmem>>, vector<64x32xbf16>
    %cst_20 = arith.constant dense<0.000000e+00> : vector<40x32xf32>
    %45 = tpu.matmul %43, %44, %cst_20 {dimension_numbers = #tpu.dot_dimension_numbers<[1], [0], [0], [1], [0, 0, 1, 1], [], []>} : vector<40x64xbf16>, vector<64x32xbf16>, vector<40x32xf32> -> vector<40x32xf32>
    %c0_21 = arith.constant 0 : index
    %c0_22 = arith.constant 0 : index
    %46 = vector.load %arg7[%c0_21, %c0_22] : memref<1x32xf32, #tpu.memory_space<vmem>>, vector<1x32xf32>
    %47 = vector.broadcast %46 : vector<1x32xf32> to vector<40x32xf32>
    %48 = arith.addf %45, %47 : vector<40x32xf32>
    %49 = arith.addf %48, %1 : vector<40x32xf32>
    %50 = arith.truncf %49 : vector<40x32xf32> to vector<40x32xbf16>
    %c0_23 = arith.constant 0 : index
    %c0_24 = arith.constant 0 : index
    %51 = vector.load %arg8[%c0_23, %c0_24] : memref<40x32xbf16, #tpu.memory_space<vmem>>, vector<40x32xbf16>
    tpu.vector_store %arg8[%c0_23, %c0_24], %50 {strides = array<i32>} : memref<40x32xbf16, #tpu.memory_space<vmem>>, vector<40x32xbf16>,
    return
  }
  func.func @transform_0(%arg0: i32) -> (i32, i32) {
    %c0_i32 = arith.constant 0 : i32
    %c0_i32_0 = arith.constant 0 : i32
    return %arg0, %c0_i32 : i32, i32
  }
  func.func @transform_1(%arg0: i32) -> (i32, i32) {
    %c0_i32 = arith.constant 0 : i32
    %c0_i32_0 = arith.constant 0 : i32
    %c0_i32_1 = arith.constant 0 : i32
    return %c0_i32, %c0_i32_0 : i32, i32
  }
  func.func @transform_2(%arg0: i32) -> (i32, i32) {
    %c0_i32 = arith.constant 0 : i32
    %c0_i32_0 = arith.constant 0 : i32
    %c0_i32_1 = arith.constant 0 : i32
    return %c0_i32, %c0_i32_0 : i32, i32
  }
  func.func @transform_3(%arg0: i32) -> (i32, i32) {
    %c0_i32 = arith.constant 0 : i32
    %c0_i32_0 = arith.constant 0 : i32
    %c0_i32_1 = arith.constant 0 : i32
    return %c0_i32, %c0_i32_0 : i32, i32
  }
  func.func @transform_4(%arg0: i32) -> (i32, i32) {
    %c0_i32 = arith.constant 0 : i32
    %c0_i32_0 = arith.constant 0 : i32
    %c0_i32_1 = arith.constant 0 : i32
    return %c0_i32, %c0_i32_0 : i32, i32
  }
  func.func @transform_5(%arg0: i32) -> (i32, i32) {
    %c0_i32 = arith.constant 0 : i32
    %c0_i32_0 = arith.constant 0 : i32
    %c0_i32_1 = arith.constant 0 : i32
    return %c0_i32, %c0_i32_0 : i32, i32
  }
  func.func @transform_6(%arg0: i32) -> (i32, i32) {
    %c0_i32 = arith.constant 0 : i32
    %c0_i32_0 = arith.constant 0 : i32
    %c0_i32_1 = arith.constant 0 : i32
    return %c0_i32, %c0_i32_0 : i32, i32
  }
  func.func @transform_7(%arg0: i32) -> (i32, i32) {
    %c0_i32 = arith.constant 0 : i32
    %c0_i32_0 = arith.constant 0 : i32
    return %arg0, %c0_i32 : i32, i32
  }
}

module attributes {stable_mosaic.version = 11 : i64} {
  func.func @_attn_kernel(%arg0: i32, %arg1: i32, %arg2: memref<1x1x4x8xbf16, #tpu.memory_space<vmem>>, %arg3: memref<1x1x4x8xbf16, #tpu.memory_space<vmem>>, %arg4: memref<1x1x4x8xbf16, #tpu.memory_space<vmem>>, %arg5: memref<1x4x32xbf16, #tpu.memory_space<vmem>>, %arg6: memref<1x8x32xbf16, #tpu.memory_space<vmem>>, %arg7: memref<1x32xf32, #tpu.memory_space<vmem>>, %arg8: memref<1x4x32xbf16, #tpu.memory_space<vmem>>, %arg9: memref<4x32xf32, #tpu.memory_space<vmem>>) attributes {dimension_semantics = [#tpu.dimension_semantics<parallel>, #tpu.dimension_semantics<arbitrary>], iteration_bounds = array<i64: 10, 4>, scalar_prefetch = 0 : i64, scratch_operands = 1 : i64, tpu.core_type = #tpu.core_type<tc>, window_params = [{transform_indices = @transform_0, window_bounds = array<i64: 1, 1, 4, 8>}, {transform_indices = @transform_1, window_bounds = array<i64: 1, 1, 4, 8>}, {transform_indices = @transform_2, window_bounds = array<i64: 1, 1, 4, 8>}, {transform_indices = @transform_3, window_bounds = array<i64: 1, 4, 32>}, {transform_indices = @transform_4, window_bounds = array<i64: 1, 8, 32>}, {pipeline_mode = #tpu.pipeline_mode<synchronous>, transform_indices = @transform_5, window_bounds = array<i64: 1, 32>}, {transform_indices = @transform_6, window_bounds = array<i64: 1, 4, 32>}]} {
    %c0_i32 = arith.constant 0 : i32
    %0 = arith.cmpi eq, %arg1, %c0_i32 : i32
    %1 = arith.extui %0 : i1 to i32
    %c0_i32_0 = arith.constant 0 : i32
    %2 = arith.cmpi ne, %1, %c0_i32_0 : i32
    scf.if %2 {
      %cst_25 = arith.constant 0.000000e+00 : f32
      %33 = vector.broadcast %cst_25 : f32 to vector<4x32xf32>
      %c0_26 = arith.constant 0 : index
      %c0_27 = arith.constant 0 : index
      %34 = vector.load %arg9[%c0_26, %c0_27] : memref<4x32xf32, #tpu.memory_space<vmem>>, vector<4x32xf32>
      tpu.vector_store %arg9[%c0_26, %c0_27], %33 {strides = array<i32>} : memref<4x32xf32, #tpu.memory_space<vmem>>, vector<4x32xf32>,
    } else {
    }
    %c0 = arith.constant 0 : index
    %c0_1 = arith.constant 0 : index
    %c0_2 = arith.constant 0 : index
    %c0_3 = arith.constant 0 : index
    %3 = vector.load %arg2[%c0, %c0_1, %c0_2, %c0_3] : memref<1x1x4x8xbf16, #tpu.memory_space<vmem>>, vector<1x1x4x8xbf16>
    %4 = vector.shape_cast %3 : vector<1x1x4x8xbf16> to vector<4x8xbf16>
    %c0_4 = arith.constant 0 : index
    %c0_5 = arith.constant 0 : index
    %c0_6 = arith.constant 0 : index
    %c0_7 = arith.constant 0 : index
    %5 = vector.load %arg3[%c0_4, %c0_5, %c0_6, %c0_7] : memref<1x1x4x8xbf16, #tpu.memory_space<vmem>>, vector<1x1x4x8xbf16>
    %6 = vector.shape_cast %5 : vector<1x1x4x8xbf16> to vector<4x8xbf16>
    %c0_8 = arith.constant 0 : index
    %c0_9 = arith.constant 0 : index
    %c0_10 = arith.constant 0 : index
    %c0_11 = arith.constant 0 : index
    %7 = vector.load %arg4[%c0_8, %c0_9, %c0_10, %c0_11] : memref<1x1x4x8xbf16, #tpu.memory_space<vmem>>, vector<1x1x4x8xbf16>
    %8 = vector.shape_cast %7 : vector<1x1x4x8xbf16> to vector<4x8xbf16>
    %cst = arith.constant dense<0.000000e+00> : vector<4x4xf32>
    %9 = tpu.matmul %4, %6, %cst {dimension_numbers = #tpu.dot_dimension_numbers<[1], [1], [0], [0], [0, 0, 1, 0], [], []>} : vector<4x8xbf16>, vector<4x8xbf16>, vector<4x4xf32> -> vector<4x4xf32>
    %cst_12 = arith.constant 0.353553385 : f32
    %10 = vector.broadcast %cst_12 : f32 to vector<4x4xf32>
    %11 = arith.mulf %9, %10 : vector<4x4xf32>
    %cst_13 = arith.constant dense<0xFF800000> : vector<4xf32>
    %12 = vector.multi_reduction <maximumf>, %11, %cst_13 [1] : vector<4x4xf32> to vector<4xf32>
    %13 = vector.shape_cast %12 : vector<4xf32> to vector<4x1xf32>
    %14 = vector.broadcast %13 : vector<4x1xf32> to vector<4x4xf32>
    %15 = arith.subf %11, %14 : vector<4x4xf32>
    %16 = math.exp %15 : vector<4x4xf32>
    %cst_14 = arith.constant dense<0.000000e+00> : vector<4xf32>
    %17 = vector.multi_reduction <add>, %16, %cst_14 [1] : vector<4x4xf32> to vector<4xf32>
    %18 = vector.shape_cast %17 : vector<4xf32> to vector<4x1xf32>
    %19 = vector.broadcast %18 : vector<4x1xf32> to vector<4x4xf32>
    %20 = arith.divf %16, %19 : vector<4x4xf32>
    %21 = arith.truncf %20 : vector<4x4xf32> to vector<4x4xbf16>
    %cst_15 = arith.constant dense<0.000000e+00> : vector<4x8xf32>
    %22 = tpu.matmul %21, %8, %cst_15 {dimension_numbers = #tpu.dot_dimension_numbers<[1], [0], [0], [1], [0, 0, 1, 1], [], []>} : vector<4x4xbf16>, vector<4x8xbf16>, vector<4x8xf32> -> vector<4x8xf32>
    %c0_16 = arith.constant 0 : index
    %c0_17 = arith.constant 0 : index
    %23 = vector.load %arg9[%c0_16, %c0_17] : memref<4x32xf32, #tpu.memory_space<vmem>>, vector<4x32xf32>
    %24 = arith.truncf %22 : vector<4x8xf32> to vector<4x8xbf16>
    %c0_18 = arith.constant 0 : index
    %c0_19 = arith.constant 0 : index
    %c0_20 = arith.constant 0 : index
    %25 = vector.load %arg6[%c0_18, %c0_19, %c0_20] : memref<1x8x32xbf16, #tpu.memory_space<vmem>>, vector<1x8x32xbf16>
    %26 = vector.shape_cast %25 : vector<1x8x32xbf16> to vector<8x32xbf16>
    %cst_21 = arith.constant dense<0.000000e+00> : vector<4x32xf32>
    %27 = tpu.matmul %24, %26, %cst_21 {dimension_numbers = #tpu.dot_dimension_numbers<[1], [0], [0], [1], [0, 0, 1, 1], [], []>} : vector<4x8xbf16>, vector<8x32xbf16>, vector<4x32xf32> -> vector<4x32xf32>
    %28 = arith.addf %23, %27 : vector<4x32xf32>
    %c0_22 = arith.constant 0 : index
    %c0_23 = arith.constant 0 : index
    %29 = vector.load %arg9[%c0_22, %c0_23] : memref<4x32xf32, #tpu.memory_space<vmem>>, vector<4x32xf32>
    tpu.vector_store %arg9[%c0_22, %c0_23], %28 {strides = array<i32>} : memref<4x32xf32, #tpu.memory_space<vmem>>, vector<4x32xf32>,
    %c3_i32 = arith.constant 3 : i32
    %30 = arith.cmpi eq, %arg1, %c3_i32 : i32
    %31 = arith.extui %30 : i1 to i32
    %c0_i32_24 = arith.constant 0 : i32
    %32 = arith.cmpi ne, %31, %c0_i32_24 : i32
    scf.if %32 {
      %c0_25 = arith.constant 0 : index
      %c0_26 = arith.constant 0 : index
      %33 = vector.load %arg9[%c0_25, %c0_26] : memref<4x32xf32, #tpu.memory_space<vmem>>, vector<4x32xf32>
      %c0_27 = arith.constant 0 : index
      %c0_28 = arith.constant 0 : index
      %34 = vector.load %arg7[%c0_27, %c0_28] : memref<1x32xf32, #tpu.memory_space<vmem>>, vector<1x32xf32>
      %35 = vector.broadcast %34 : vector<1x32xf32> to vector<4x32xf32>
      %36 = arith.addf %33, %35 : vector<4x32xf32>
      %c0_29 = arith.constant 0 : index
      %c0_30 = arith.constant 0 : index
      %c0_31 = arith.constant 0 : index
      %37 = vector.load %arg5[%c0_29, %c0_30, %c0_31] : memref<1x4x32xbf16, #tpu.memory_space<vmem>>, vector<1x4x32xbf16>
      %38 = vector.shape_cast %37 : vector<1x4x32xbf16> to vector<4x32xbf16>
      %39 = arith.extf %38 : vector<4x32xbf16> to vector<4x32xf32>
      %40 = arith.addf %36, %39 : vector<4x32xf32>
      %41 = arith.truncf %40 : vector<4x32xf32> to vector<4x32xbf16>
      %c0_32 = arith.constant 0 : index
      %c0_33 = arith.constant 0 : index
      %c0_34 = arith.constant 0 : index
      %42 = vector.load %arg8[%c0_32, %c0_33, %c0_34] : memref<1x4x32xbf16, #tpu.memory_space<vmem>>, vector<1x4x32xbf16>
      %43 = vector.shape_cast %42 : vector<1x4x32xbf16> to vector<4x32xbf16>
      %44 = vector.shape_cast %41 : vector<4x32xbf16> to vector<1x4x32xbf16>
      tpu.vector_store %arg8[%c0_32, %c0_33, %c0_34], %44 {strides = array<i32>} : memref<1x4x32xbf16, #tpu.memory_space<vmem>>, vector<1x4x32xbf16>,
    } else {
    }
    return
  }
  func.func @transform_0(%arg0: i32, %arg1: i32) -> (i32, i32, i32, i32) {
    %c0_i32 = arith.constant 0 : i32
    %c0_i32_0 = arith.constant 0 : i32
    %c0_i32_1 = arith.constant 0 : i32
    return %arg0, %arg1, %c0_i32, %c0_i32_0 : i32, i32, i32, i32
  }
  func.func @transform_1(%arg0: i32, %arg1: i32) -> (i32, i32, i32, i32) {
    %c0_i32 = arith.constant 0 : i32
    %c0_i32_0 = arith.constant 0 : i32
    %c0_i32_1 = arith.constant 0 : i32
    return %arg0, %arg1, %c0_i32, %c0_i32_0 : i32, i32, i32, i32
  }
  func.func @transform_2(%arg0: i32, %arg1: i32) -> (i32, i32, i32, i32) {
    %c0_i32 = arith.constant 0 : i32
    %c0_i32_0 = arith.constant 0 : i32
    %c0_i32_1 = arith.constant 0 : i32
    return %arg0, %arg1, %c0_i32, %c0_i32_0 : i32, i32, i32, i32
  }
  func.func @transform_3(%arg0: i32, %arg1: i32) -> (i32, i32, i32) {
    %c0_i32 = arith.constant 0 : i32
    %c0_i32_0 = arith.constant 0 : i32
    %c0_i32_1 = arith.constant 0 : i32
    return %arg0, %c0_i32, %c0_i32_0 : i32, i32, i32
  }
  func.func @transform_4(%arg0: i32, %arg1: i32) -> (i32, i32, i32) {
    %c0_i32 = arith.constant 0 : i32
    %c0_i32_0 = arith.constant 0 : i32
    %c0_i32_1 = arith.constant 0 : i32
    return %arg1, %c0_i32, %c0_i32_0 : i32, i32, i32
  }
  func.func @transform_5(%arg0: i32, %arg1: i32) -> (i32, i32) {
    %c0_i32 = arith.constant 0 : i32
    %c0_i32_0 = arith.constant 0 : i32
    %c0_i32_1 = arith.constant 0 : i32
    return %c0_i32, %c0_i32_0 : i32, i32
  }
  func.func @transform_6(%arg0: i32, %arg1: i32) -> (i32, i32, i32) {
    %c0_i32 = arith.constant 0 : i32
    %c0_i32_0 = arith.constant 0 : i32
    %c0_i32_1 = arith.constant 0 : i32
    return %arg0, %c0_i32, %c0_i32_0 : i32, i32, i32
  }
}

module attributes {stable_mosaic.version = 11 : i64} {
  func.func @_layernorm_kernel(%arg0: i32, %arg1: memref<40x32xbf16, #tpu.memory_space<vmem>>, %arg2: memref<1x32xf32, #tpu.memory_space<vmem>>, %arg3: memref<1x32xf32, #tpu.memory_space<vmem>>, %arg4: memref<40x32xf32, #tpu.memory_space<vmem>>) attributes {dimension_semantics = [#tpu.dimension_semantics<parallel>], iteration_bounds = array<i64: 1>, scalar_prefetch = 0 : i64, scratch_operands = 0 : i64, tpu.core_type = #tpu.core_type<tc>, window_params = [{transform_indices = @transform_0, window_bounds = array<i64: 40, 32>}, {pipeline_mode = #tpu.pipeline_mode<synchronous>, transform_indices = @transform_1, window_bounds = array<i64: 1, 32>}, {pipeline_mode = #tpu.pipeline_mode<synchronous>, transform_indices = @transform_2, window_bounds = array<i64: 1, 32>}, {transform_indices = @transform_3, window_bounds = array<i64: 40, 32>}]} {
    %c0 = arith.constant 0 : index
    %c0_0 = arith.constant 0 : index
    %0 = vector.load %arg1[%c0, %c0_0] : memref<40x32xbf16, #tpu.memory_space<vmem>>, vector<40x32xbf16>
    %1 = arith.extf %0 : vector<40x32xbf16> to vector<40x32xf32>
    %cst = arith.constant dense<0.000000e+00> : vector<40xf32>
    %2 = vector.multi_reduction <add>, %1, %cst [1] : vector<40x32xf32> to vector<40xf32>
    %3 = vector.shape_cast %2 : vector<40xf32> to vector<40x1xf32>
    %cst_1 = arith.constant 3.200000e+01 : f32
    %4 = vector.broadcast %cst_1 : f32 to vector<40x1xf32>
    %5 = arith.divf %3, %4 : vector<40x1xf32>
    %6 = vector.broadcast %5 : vector<40x1xf32> to vector<40x32xf32>
    %7 = arith.subf %1, %6 : vector<40x32xf32>
    %8 = arith.mulf %7, %7 : vector<40x32xf32>
    %cst_2 = arith.constant dense<0.000000e+00> : vector<40xf32>
    %9 = vector.multi_reduction <add>, %8, %cst_2 [1] : vector<40x32xf32> to vector<40xf32>
    %10 = vector.shape_cast %9 : vector<40xf32> to vector<40x1xf32>
    %cst_3 = arith.constant 3.200000e+01 : f32
    %11 = vector.broadcast %cst_3 : f32 to vector<40x1xf32>
    %12 = arith.divf %10, %11 : vector<40x1xf32>
    %cst_4 = arith.constant 9.99999997E-7 : f32
    %13 = vector.broadcast %cst_4 : f32 to vector<40x1xf32>
    %14 = arith.addf %12, %13 : vector<40x1xf32>
    %15 = math.rsqrt %14 : vector<40x1xf32>
    %16 = vector.broadcast %15 : vector<40x1xf32> to vector<40x32xf32>
    %17 = arith.mulf %7, %16 : vector<40x32xf32>
    %c0_5 = arith.constant 0 : index
    %c0_6 = arith.constant 0 : index
    %18 = vector.load %arg2[%c0_5, %c0_6] : memref<1x32xf32, #tpu.memory_space<vmem>>, vector<1x32xf32>
    %19 = vector.broadcast %18 : vector<1x32xf32> to vector<40x32xf32>
    %20 = arith.mulf %17, %19 : vector<40x32xf32>
    %c0_7 = arith.constant 0 : index
    %c0_8 = arith.constant 0 : index
    %21 = vector.load %arg3[%c0_7, %c0_8] : memref<1x32xf32, #tpu.memory_space<vmem>>, vector<1x32xf32>
    %22 = vector.broadcast %21 : vector<1x32xf32> to vector<40x32xf32>
    %23 = arith.addf %20, %22 : vector<40x32xf32>
    %c0_9 = arith.constant 0 : index
    %c0_10 = arith.constant 0 : index
    %24 = vector.load %arg4[%c0_9, %c0_10] : memref<40x32xf32, #tpu.memory_space<vmem>>, vector<40x32xf32>
    tpu.vector_store %arg4[%c0_9, %c0_10], %23 {strides = array<i32>} : memref<40x32xf32, #tpu.memory_space<vmem>>, vector<40x32xf32>,
    return
  }
  func.func @transform_0(%arg0: i32) -> (i32, i32) {
    %c0_i32 = arith.constant 0 : i32
    %c0_i32_0 = arith.constant 0 : i32
    return %arg0, %c0_i32 : i32, i32
  }
  func.func @transform_1(%arg0: i32) -> (i32, i32) {
    %c0_i32 = arith.constant 0 : i32
    %c0_i32_0 = arith.constant 0 : i32
    %c0_i32_1 = arith.constant 0 : i32
    return %c0_i32, %c0_i32_0 : i32, i32
  }
  func.func @transform_2(%arg0: i32) -> (i32, i32) {
    %c0_i32 = arith.constant 0 : i32
    %c0_i32_0 = arith.constant 0 : i32
    %c0_i32_1 = arith.constant 0 : i32
    return %c0_i32, %c0_i32_0 : i32, i32
  }
  func.func @transform_3(%arg0: i32) -> (i32, i32) {
    %c0_i32 = arith.constant 0 : i32
    %c0_i32_0 = arith.constant 0 : i32
    return %arg0, %c0_i32 : i32, i32
  }
}

</mosaic_0001>

<llo_original>
// kernel: _lambda_.9
$region0: #{_lambda_.9}
  #allocation0 [shape = 'u32[]', space=smem, size = 0x4, offset = 0x4, fixed_abs, tag = 'smem constant byte address 0x4 - core index']
  #allocation1 [shape = 'u32[144,128]{1,0:T(1,128)}', space=vmem, size = 0x12000, scoped, tag = 'internal scratch']
  %s0 = inlined_call_operand.vmem [shape: bf16[40,32], index: 0, kind: input, shape index: {}]
  %s1 = inlined_call_operand.vmem [shape: f32[1,32], index: 1, kind: input, shape index: {}]
  %s2 = inlined_call_operand.vmem [shape: f32[1,32], index: 2, kind: input, shape index: {}]
  %s3 = inlined_call_operand.vmem [shape: bf16[32,96], index: 3, kind: input, shape index: {}]
  %s4 = inlined_call_operand.vmem [shape: f32[1,96], index: 4, kind: input, shape index: {}]
  %s5 = inlined_call_operand.vmem [shape: bf16[40,96], index: 5, kind: output, shape index: {}]
  %s6 = sld [smem:[#allocation0]]
  $region30: #{_lambda_.9} parent=0
    _
  %s8 = ssub.s32 1, %s6
  %s9 = scalar_select 0, %s8, %s6
  // Predicated region
  $region2: #{_lambda_.9} parent=0 // pred_check
    _
  $region3: #{_lambda_.9} parent=0 // pred_check_branch
    %11 = sbr.rel (0) target = $region5
  $region4: #{_lambda_.9} parent=0 // pred_region
    _
  $region5: #{_lambda_.9} parent=0 // pred_fallthru
    _
  // Predicated region
  $region6: #{_lambda_.9} parent=0 // pred_check
    _
  $region7: #{_lambda_.9} parent=0 // pred_check_branch
    %13 = sbr.rel (0) target = $region9
  $region8: #{_lambda_.9} parent=0 // pred_region
    _
  $region9: #{_lambda_.9} parent=0 // pred_fallthru
    _
  // Predicated region
  $region10: #{_lambda_.9} parent=0 // pred_check
    _
  $region11: #{_lambda_.9} parent=0 // pred_check_branch
    %15 = sbr.rel (0) target = $region13
  $region12: #{_lambda_.9} parent=0 // pred_region
    _
  $region13: #{_lambda_.9} parent=0 // pred_fallthru
    _
  // Predicated region
  $region14: #{_lambda_.9} parent=0 // pred_check
    _
  $region15: #{_lambda_.9} parent=0 // pred_check_branch
    %17 = sbr.rel (0) target = $region17
  $region16: #{_lambda_.9} parent=0 // pred_region
    _
  $region17: #{_lambda_.9} parent=0 // pred_fallthru
    _
  // Predicated region
  $region18: #{_lambda_.9} parent=0 // pred_check
    _
  $region19: #{_lambda_.9} parent=0 // pred_check_branch
    %19 = sbr.rel (0) target = $region21
  $region20: #{_lambda_.9} parent=0 // pred_region
    _
  $region21: #{_lambda_.9} parent=0 // pred_fallthru
    _
  %v21 = vld [vmem:[%s0] sm:$0xf]
  %v22 = vld [vmem:[%s0 + $0x4] sm:$0xf]
  %v23 = vld [vmem:[%s0 + $0x8] sm:$0xf]
  %v24 = vld [vmem:[%s0 + $0xc] sm:$0xf]
  %v25 = vld [vmem:[%s0 + $0x10] sm:$0xf]
  %v26 = vunpack.c.l.bf16 %v21
  %v27 = vunpack.c.l.bf16 %v22
  %v28 = vunpack.c.l.bf16 %v23
  %v29 = vunpack.c.l.bf16 %v24
  %v30 = vunpack.c.l.bf16 %v25
  %vm31 = vcmask 261120
  %v32 = vsel %vm31, %v26, 0.0
  %33 = vadd.xlane.f32.xlu0 %v32
  %v34 = vpop.xlane.xlu0 %33
  %v35 = vsel %vm31, %v27, 0.0
  %36 = vadd.xlane.f32.xlu0 %v35
  %v37 = vpop.xlane.xlu0 %36
  %v38 = vsel %vm31, %v28, 0.0
  %39 = vadd.xlane.f32.xlu0 %v38
  %v40 = vpop.xlane.xlu0 %39
  %v41 = vsel %vm31, %v29, 0.0
  %42 = vadd.xlane.f32.xlu0 %v41
  %v43 = vpop.xlane.xlu0 %42
  %v44 = vsel %vm31, %v30, 0.0
  %45 = vadd.xlane.f32.xlu0 %v44
  %v46 = vpop.xlane.xlu0 %45
  %v47 = vrcp.pop 32.0
  %v48 = vmul.f32 %v34, %v47
  %v49 = vmul.f32 %v37, %v47
  %v50 = vmul.f32 %v40, %v47
  %v51 = vmul.f32 %v43, %v47
  %v52 = vmul.f32 %v46, %v47
  %v53 = vsub.f32 %v26, %v48
  %v54 = vsub.f32 %v27, %v49
  %v55 = vsub.f32 %v28, %v50
  %v56 = vsub.f32 %v29, %v51
  %v57 = vsub.f32 %v30, %v52
  %v58 = vmul.f32 %v53, %v53
  %v59 = vmul.f32 %v54, %v54
  %v60 = vmul.f32 %v55, %v55
  %v61 = vmul.f32 %v56, %v56
  %v62 = vmul.f32 %v57, %v57
  %v63 = vsel %vm31, %v58, 0.0
  %64 = vadd.xlane.f32.xlu0 %v63
  %v65 = vpop.xlane.xlu0 %64
  %v66 = vsel %vm31, %v59, 0.0
  %67 = vadd.xlane.f32.xlu0 %v66
  %v68 = vpop.xlane.xlu0 %67
  %v69 = vsel %vm31, %v60, 0.0
  %70 = vadd.xlane.f32.xlu0 %v69
  %v71 = vpop.xlane.xlu0 %70
  %v72 = vsel %vm31, %v61, 0.0
  %73 = vadd.xlane.f32.xlu0 %v72
  %v74 = vpop.xlane.xlu0 %73
  %v75 = vsel %vm31, %v62, 0.0
  %76 = vadd.xlane.f32.xlu0 %v75
  %v77 = vpop.xlane.xlu0 %76
  %v78 = vmul.f32 %v65, %v47
  %v79 = vmul.f32 %v68, %v47
  %v80 = vmul.f32 %v71, %v47
  %v81 = vmul.f32 %v74, %v47
  %v82 = vmul.f32 %v77, %v47
  %v83 = vadd.f32 %v78, 1e-06
  %v84 = vadd.f32 %v79, 1e-06
  %v85 = vadd.f32 %v80, 1e-06
  %v86 = vadd.f32 %v81, 1e-06
  %v87 = vadd.f32 %v82, 1e-06
  %v88 = vrsqrt.pop %v83
  %v89 = vrsqrt.pop %v84
  %v90 = vrsqrt.pop %v85
  %v91 = vrsqrt.pop %v86
  %v92 = vrsqrt.pop %v87
  %v93 = vmul.f32 %v53, %v88
  %v94 = vmul.f32 %v54, %v89
  %v95 = vmul.f32 %v55, %v90
  %v96 = vmul.f32 %v56, %v91
  %v97 = vmul.f32 %v57, %v92
  %v98 = vld [vmem:[%s1] sm:$0x1]
  %v100 = vlaneseq
  %v101 = vshrl.u32 %v100, 7
  %v102 = vsub.s32 0, %v101
  %v103 = vrot.slane %v98, %v102
  %v105 = vmul.f32 %v93, %v103
  %v106 = vmul.f32 %v94, %v103
  %v107 = vmul.f32 %v95, %v103
  %v108 = vmul.f32 %v96, %v103
  %v109 = vmul.f32 %v97, %v103
  %v110 = vld [vmem:[%s2] sm:$0x1]
  %v112 = vlaneseq
  %v113 = vshrl.u32 %v112, 7
  %v114 = vsub.s32 0, %v113
  %v115 = vrot.slane %v110, %v114
  %v117 = vadd.f32 %v105, %v115
  %v118 = vadd.f32 %v106, %v115
  %v119 = vadd.f32 %v107, %v115
  %v120 = vadd.f32 %v108, %v115
  %v121 = vadd.f32 %v109, %v115
  %v122 = vpack.c.bf16 %v118, %v117
  %v123 = vpack.c.bf16 %v120, %v119
  %v124 = vpack.c.bf16 %v121, %v121
  %v125 = vld [vmem:[%s3] sm:$0xf]
  %v126 = vld [vmem:[%s3 + $0x4] sm:$0xf]
  %v127 = vld [vmem:[%s3 + $0x8] sm:$0xf]
  %v128 = vld [vmem:[%s3 + $0xc] sm:$0xf]
  %v129 = vld [vmem:[%s4] sm:$0x1]
  %v131 = vlaneseq
  %v132 = vshrl.u32 %v131, 7
  %v133 = vsub.s32 0, %v132
  %v134 = vrot.slane %v129, %v133
  %v140 = vunpack.c.l.b16 %v125
  %v141 = vunpack.c.l.b16 %v126
  %v142 = vunpack.c.l.b16 %v127
  %v143 = vunpack.c.l.b16 %v128
  %v144 = vpack.c.b16 %v141, %v140
  %v145 = vpack.c.b16 %v143, %v142
  %v149 = vsel %vm31, %v122, 0
  %v152 = vsel %vm31, %v123, 0
  %v155 = vsel %vm31, %v124, 0
  %157 = vmatprep.subr.bf16.mxu0 0
  %158 = vmatpush1.bf16.msra.mxu0 0
  %159 = vmatprep.subr.bf16.mxu0 0
  %160 = vmatpush1.bf16.msra.mxu0 0
  %161 = vmatprep.subr.bf16.mxu0 0
  %162 = vmatpush1.bf16.msra.mxu0 0
  %163 = vmatprep.subr.bf16.mxu0 0
  %164 = vmatpush1.bf16.msra.mxu0 0
  %165 = vmatprep.subr.bf16.mxu0 0
  %166 = vmatpush1.bf16.msra.mxu0 0
  %167 = vmatprep.subr.bf16.mxu0 0
  %168 = vmatpush1.bf16.msra.mxu0 0
  %169 = vmatprep.subr.bf16.mxu0 0
  %170 = vmatpush1.bf16.msra.mxu0 %v145
  %171 = vmatprep.subr.bf16.mxu0 0
  %172 = vmatpush1.bf16.msra.mxu0 %v144
  %173 = vmatprep.subr.bf16.mxu0 0
  %174 = vmatpush2.bf16.msra.mxu0 0
  %175 = vmatprep.subr.bf16.mxu0 0
  %176 = vmatpush2.bf16.msra.mxu0 0
  %177 = vmatprep.subr.bf16.mxu0 0
  %178 = vmatpush2.bf16.msra.mxu0 0
  %179 = vmatprep.subr.bf16.mxu0 0
  %180 = vmatpush2.bf16.msra.mxu0 0
  %181 = vmatprep.subr.bf16.mxu0 0
  %182 = vmatpush2.bf16.msra.mxu0 0
  %183 = vmatprep.subr.bf16.mxu0 0
  %184 = vmatpush2.bf16.msra.mxu0 0
  %185 = vmatprep.subr.bf16.mxu0 0
  %186 = vmatpush2.bf16.msra.mxu0 0
  %187 = vmatprep.subr.bf16.mxu0 0
  %188 = vmatpush2.bf16.msra.mxu0 0
  %189 = vmatprep.mubr.bf16.mxu0 0
  %190 = vmatmul.mubr.bf16.gmra.mxu0 %v149
  %v191 = vpop.f32.mrf.mxu0
  %v192 = vadd.f32 %v134, %v191
  %v193 = vpop.f32.mrf.mxu0
  %v194 = vpop.f32.mrf.mxu0
  %v195 = vadd.f32 %v134, %v194
  %v196 = vpop.f32.mrf.mxu0
  %197 = vmatprep.mubr.bf16.mxu0 0
  %198 = vmatmul.mubr.bf16.gmra.mxu0 %v152
  %v199 = vpop.f32.mrf.mxu0
  %v200 = vadd.f32 %v134, %v199
  %v201 = vpop.f32.mrf.mxu0
  %v202 = vpop.f32.mrf.mxu0
  %v203 = vadd.f32 %v134, %v202
  %v204 = vpop.f32.mrf.mxu0
  %205 = vmatprep.mubr.bf16.mxu0 0
  %206 = vmatmul.mubr.bf16.gmra.mxu0 %v155
  %v207 = vpop.f32.mrf.mxu0
  %v208 = vadd.f32 %v134, %v207
  %v209 = vpop.f32.mrf.mxu0
  %v210 = vpop.f32.mrf.mxu0
  %v211 = vpop.f32.mrf.mxu0
  %212 = vdwg.mxu0
  %v213 = vpack.c.bf16 %v195, %v192
  %v214 = vpack.c.bf16 %v203, %v200
  %v215 = vpack.c.bf16 %v208, %v208
  %v219 = vunpack.c.l.b16 %v213
  %v220 = vunpack.c.h.b16 %v213
  %v221 = vunpack.c.l.b16 %v214
  %v222 = vunpack.c.h.b16 %v214
  %v223 = vunpack.c.l.b16 %v215
  %v224 = vpack.c.b16 %v219, %v219
  %v225 = vpack.c.b16 %v220, %v220
  %v226 = vpack.c.b16 %v221, %v221
  %v227 = vpack.c.b16 %v222, %v222
  %v228 = vpack.c.b16 %v223, %v223
  %vm234 = vcmask 781312
  %235 = vst.msk [vmem:[%s5] sm:$0xf] %vm234, %v224
  %236 = vst.msk [vmem:[%s5 + $0x4] sm:$0xf] %vm234, %v225
  %237 = vst.msk [vmem:[%s5 + $0x8] sm:$0xf] %vm234, %v226
  %238 = vst.msk [vmem:[%s5 + $0xc] sm:$0xf] %vm234, %v227
  %239 = vst.msk [vmem:[%s5 + $0x10] sm:$0xf] %vm234, %v228
  // Predicated region
  $region22: #{_lambda_.9} parent=0 // pred_check
    _
  $region23: #{_lambda_.9} parent=0 // pred_check_branch
    %241 = sbr.rel (0) target = $region25
  $region24: #{_lambda_.9} parent=0 // pred_region
    _
  $region25: #{_lambda_.9} parent=0 // pred_fallthru
    _
  // Predicated region
  $region26: #{_lambda_.9} parent=0 // pred_check
    _
  $region27: #{_lambda_.9} parent=0 // pred_check_branch
    %243 = sbr.rel (0) target = $region29
  $region28: #{_lambda_.9} parent=0 // pred_region
    _
  $region29: #{_lambda_.9} parent=0 // pred_fallthru
    _

// kernel: _lambda_.8
$region0: #{_lambda_.8}
  #allocation0 [shape = 'u32[]', space=smem, size = 0x4, offset = 0x4, fixed_abs, tag = 'smem constant byte address 0x4 - core index']
  #allocation1 [shape = 'u32[144,128]{1,0:T(1,128)}', space=vmem, size = 0x12000, scoped, tag = 'internal scratch']
  %s0 = inlined_call_operand.vmem [shape: bf16[40,192], index: 0, kind: input, shape index: {}]
  %s1 = inlined_call_operand.vmem [shape: bf16[192,32], index: 1, kind: input, shape index: {}]
  %s2 = inlined_call_operand.vmem [shape: f32[1,32], index: 2, kind: input, shape index: {}]
  %s3 = inlined_call_operand.vmem [shape: f32[40,32], index: 3, kind: input, shape index: {}]
  %s4 = inlined_call_operand.vmem [shape: bf16[40,32], index: 4, kind: output, shape index: {}]
  %s5 = sld [smem:[#allocation0]]
  $region26: #{_lambda_.8} parent=0
    _
  %s7 = ssub.s32 1, %s5
  %s8 = scalar_select 0, %s7, %s5
  // Predicated region
  $region2: #{_lambda_.8} parent=0 // pred_check
    _
  $region3: #{_lambda_.8} parent=0 // pred_check_branch
    %10 = sbr.rel (0) target = $region5
  $region4: #{_lambda_.8} parent=0 // pred_region
    _
  $region5: #{_lambda_.8} parent=0 // pred_fallthru
    _
  // Predicated region
  $region6: #{_lambda_.8} parent=0 // pred_check
    _
  $region7: #{_lambda_.8} parent=0 // pred_check_branch
    %12 = sbr.rel (0) target = $region9
  $region8: #{_lambda_.8} parent=0 // pred_region
    _
  $region9: #{_lambda_.8} parent=0 // pred_fallthru
    _
  // Predicated region
  $region10: #{_lambda_.8} parent=0 // pred_check
    _
  $region11: #{_lambda_.8} parent=0 // pred_check_branch
    %14 = sbr.rel (0) target = $region13
  $region12: #{_lambda_.8} parent=0 // pred_region
    _
  $region13: #{_lambda_.8} parent=0 // pred_fallthru
    _
  // Predicated region
  $region14: #{_lambda_.8} parent=0 // pred_check
    _
  $region15: #{_lambda_.8} parent=0 // pred_check_branch
    %16 = sbr.rel (0) target = $region17
  $region16: #{_lambda_.8} parent=0 // pred_region
    _
  $region17: #{_lambda_.8} parent=0 // pred_fallthru
    _
  %v18 = vld [vmem:[%s0] sm:$0xff]
  %v19 = vld [vmem:[%s0 + $0x8] sm:$0xff]
  %v20 = vld [vmem:[%s0 + $0x10] sm:$0xff]
  %v21 = vld [vmem:[%s0 + $0x18] sm:$0xff]
  %v22 = vld [vmem:[%s0 + $0x20] sm:$0xff]
  %v23 = vld [vmem:[%s1] sm:$0xf]
  %v24 = vld [vmem:[%s1 + $0x4] sm:$0xf]
  %v25 = vld [vmem:[%s1 + $0x8] sm:$0xf]
  %v26 = vld [vmem:[%s1 + $0xc] sm:$0xf]
  %v27 = vld [vmem:[%s1 + $0x10] sm:$0xf]
  %v28 = vld [vmem:[%s1 + $0x14] sm:$0xf]
  %v29 = vld [vmem:[%s1 + $0x18] sm:$0xf]
  %v30 = vld [vmem:[%s1 + $0x1c] sm:$0xf]
  %v31 = vld [vmem:[%s1 + $0x20] sm:$0xf]
  %v32 = vld [vmem:[%s1 + $0x24] sm:$0xf]
  %v33 = vld [vmem:[%s1 + $0x28] sm:$0xf]
  %v34 = vld [vmem:[%s1 + $0x2c] sm:$0xf]
  %v35 = vld [vmem:[%s1 + $0x30] sm:$0xf]
  %v36 = vld [vmem:[%s1 + $0x34] sm:$0xf]
  %v37 = vld [vmem:[%s1 + $0x38] sm:$0xf]
  %v38 = vld [vmem:[%s1 + $0x3c] sm:$0xf]
  %v39 = vld [vmem:[%s1 + $0x40] sm:$0xf]
  %v40 = vld [vmem:[%s1 + $0x44] sm:$0xf]
  %v41 = vld [vmem:[%s1 + $0x48] sm:$0xf]
  %v42 = vld [vmem:[%s1 + $0x4c] sm:$0xf]
  %v43 = vld [vmem:[%s1 + $0x50] sm:$0xf]
  %v44 = vld [vmem:[%s1 + $0x54] sm:$0xf]
  %v45 = vld [vmem:[%s1 + $0x58] sm:$0xf]
  %v46 = vld [vmem:[%s1 + $0x5c] sm:$0xf]
  %v47 = vld [vmem:[%s2] sm:$0x1]
  %v49 = vlaneseq
  %v50 = vshrl.u32 %v49, 7
  %v51 = vsub.s32 0, %v50
  %v52 = vrot.slane %v47, %v51
  %v59 = vunpack.c.l.b16 %v18
  %v60 = vunpack.c.h.b16 %v18
  %v61 = vunpack.c.l.b16 %v19
  %v62 = vunpack.c.h.b16 %v19
  %v63 = vunpack.c.l.b16 %v20
  %v64 = vunpack.c.h.b16 %v20
  %v65 = vunpack.c.l.b16 %v21
  %v66 = vunpack.c.h.b16 %v21
  %v67 = vunpack.c.l.b16 %v22
  %v68 = vunpack.c.h.b16 %v22
  %v69 = vpack.c.b16 %v61, %v59
  %v70 = vpack.c.b16 %v62, %v60
  %v71 = vpack.c.b16 %v65, %v63
  %v72 = vpack.c.b16 %v66, %v64
  %v73 = vpack.c.b16 %v67, %v67
  %v74 = vpack.c.b16 %v68, %v68
  %v102 = vunpack.c.l.b16 %v23
  %v103 = vunpack.c.l.b16 %v24
  %v104 = vunpack.c.l.b16 %v25
  %v105 = vunpack.c.l.b16 %v26
  %v106 = vunpack.c.l.b16 %v27
  %v107 = vunpack.c.l.b16 %v28
  %v108 = vunpack.c.l.b16 %v29
  %v109 = vunpack.c.l.b16 %v30
  %v110 = vunpack.c.l.b16 %v31
  %v111 = vunpack.c.l.b16 %v32
  %v112 = vunpack.c.l.b16 %v33
  %v113 = vunpack.c.l.b16 %v34
  %v114 = vunpack.c.l.b16 %v35
  %v115 = vunpack.c.l.b16 %v36
  %v116 = vunpack.c.l.b16 %v37
  %v117 = vunpack.c.l.b16 %v38
  %v118 = vunpack.c.l.b16 %v39
  %v119 = vunpack.c.l.b16 %v40
  %v120 = vunpack.c.l.b16 %v41
  %v121 = vunpack.c.l.b16 %v42
  %v122 = vunpack.c.l.b16 %v43
  %v123 = vunpack.c.l.b16 %v44
  %v124 = vunpack.c.l.b16 %v45
  %v125 = vunpack.c.l.b16 %v46
  %v126 = vpack.c.b16 %v103, %v102
  %v127 = vpack.c.b16 %v105, %v104
  %v128 = vpack.c.b16 %v107, %v106
  %v129 = vpack.c.b16 %v109, %v108
  %v130 = vpack.c.b16 %v111, %v110
  %v131 = vpack.c.b16 %v113, %v112
  %v132 = vpack.c.b16 %v115, %v114
  %v133 = vpack.c.b16 %v117, %v116
  %v134 = vpack.c.b16 %v119, %v118
  %v135 = vpack.c.b16 %v121, %v120
  %v136 = vpack.c.b16 %v123, %v122
  %v137 = vpack.c.b16 %v125, %v124
  %vm150 = vcmask 523264
  %v152 = vsel %vm150, %v70, 0
  %v155 = vsel %vm150, %v72, 0
  %v158 = vsel %vm150, %v74, 0
  %160 = vmatprep.subr.bf16.mxu0 0
  %161 = vmatpush1.bf16.msra.mxu0 %v133
  %162 = vmatprep.subr.bf16.mxu0 0
  %163 = vmatpush1.bf16.msra.mxu0 %v132
  %164 = vmatprep.subr.bf16.mxu0 0
  %165 = vmatpush1.bf16.msra.mxu0 %v131
  %166 = vmatprep.subr.bf16.mxu0 0
  %167 = vmatpush1.bf16.msra.mxu0 %v130
  %168 = vmatprep.subr.bf16.mxu0 0
  %169 = vmatpush1.bf16.msra.mxu0 %v129
  %170 = vmatprep.subr.bf16.mxu0 0
  %171 = vmatpush1.bf16.msra.mxu0 %v128
  %172 = vmatprep.subr.bf16.mxu0 0
  %173 = vmatpush1.bf16.msra.mxu0 %v127
  %174 = vmatprep.subr.bf16.mxu0 0
  %175 = vmatpush1.bf16.msra.mxu0 %v126
  %176 = vmatprep.subr.bf16.mxu0 0
  %177 = vmatpush2.bf16.msra.mxu0 0
  %178 = vmatprep.subr.bf16.mxu0 0
  %179 = vmatpush2.bf16.msra.mxu0 0
  %180 = vmatprep.subr.bf16.mxu0 0
  %181 = vmatpush2.bf16.msra.mxu0 0
  %182 = vmatprep.subr.bf16.mxu0 0
  %183 = vmatpush2.bf16.msra.mxu0 0
  %184 = vmatprep.subr.bf16.mxu0 0
  %185 = vmatpush2.bf16.msra.mxu0 %v137
  %186 = vmatprep.subr.bf16.mxu0 0
  %187 = vmatpush2.bf16.msra.mxu0 %v136
  %188 = vmatprep.subr.bf16.mxu0 0
  %189 = vmatpush2.bf16.msra.mxu0 %v135
  %190 = vmatprep.subr.bf16.mxu0 0
  %191 = vmatpush2.bf16.msra.mxu0 %v134
  %192 = vmatprep.mubr.bf16.mxu0 %v152
  %193 = vmatmul.mubr.bf16.gmra.mxu0 %v69
  %v194 = vpop.f32.mrf.mxu0
  %v195 = vadd.f32 %v52, %v194
  %v196 = vpop.f32.mrf.mxu0
  %v197 = vpop.f32.mrf.mxu0
  %v198 = vadd.f32 %v52, %v197
  %v199 = vpop.f32.mrf.mxu0
  %200 = vmatprep.mubr.bf16.mxu0 %v155
  %201 = vmatmul.mubr.bf16.gmra.mxu0 %v71
  %v202 = vpop.f32.mrf.mxu0
  %v203 = vadd.f32 %v52, %v202
  %v204 = vpop.f32.mrf.mxu0
  %v205 = vpop.f32.mrf.mxu0
  %v206 = vadd.f32 %v52, %v205
  %v207 = vpop.f32.mrf.mxu0
  %208 = vmatprep.mubr.bf16.mxu0 %v158
  %209 = vmatmul.mubr.bf16.gmra.mxu0 %v73
  %v210 = vpop.f32.mrf.mxu0
  %v211 = vadd.f32 %v52, %v210
  %v212 = vpop.f32.mrf.mxu0
  %v213 = vpop.f32.mrf.mxu0
  %v214 = vpop.f32.mrf.mxu0
  %215 = vdwg.mxu0
  %v216 = vld [vmem:[%s3] sm:$0xff]
  %v217 = vld [vmem:[%s3 + $0x8] sm:$0xff]
  %v218 = vld [vmem:[%s3 + $0x10] sm:$0xff]
  %v219 = vld [vmem:[%s3 + $0x18] sm:$0xff]
  %v220 = vld [vmem:[%s3 + $0x20] sm:$0xff]
  %v221 = vadd.f32 %v195, %v216
  %v222 = vadd.f32 %v198, %v217
  %v223 = vadd.f32 %v203, %v218
  %v224 = vadd.f32 %v206, %v219
  %v225 = vadd.f32 %v211, %v220
  %v226 = vpack.c.bf16 %v222, %v221
  %v227 = vpack.c.bf16 %v224, %v223
  %v228 = vpack.c.bf16 %v225, %v225
  %v232 = vunpack.c.l.b16 %v226
  %v233 = vunpack.c.h.b16 %v226
  %v234 = vunpack.c.l.b16 %v227
  %v235 = vunpack.c.h.b16 %v227
  %v236 = vunpack.c.l.b16 %v228
  %v237 = vpack.c.b16 %v232, %v232
  %v238 = vpack.c.b16 %v233, %v233
  %v239 = vpack.c.b16 %v234, %v234
  %v240 = vpack.c.b16 %v235, %v235
  %v241 = vpack.c.b16 %v236, %v236
  %vm247 = vcmask 257024
  %248 = vst.msk [vmem:[%s4] sm:$0xf] %vm247, %v237
  %249 = vst.msk [vmem:[%s4 + $0x4] sm:$0xf] %vm247, %v238
  %250 = vst.msk [vmem:[%s4 + $0x8] sm:$0xf] %vm247, %v239
  %251 = vst.msk [vmem:[%s4 + $0xc] sm:$0xf] %vm247, %v240
  %252 = vst.msk [vmem:[%s4 + $0x10] sm:$0xf] %vm247, %v241
  // Predicated region
  $region18: #{_lambda_.8} parent=0 // pred_check
    _
  $region19: #{_lambda_.8} parent=0 // pred_check_branch
    %254 = sbr.rel (0) target = $region21
  $region20: #{_lambda_.8} parent=0 // pred_region
    _
  $region21: #{_lambda_.8} parent=0 // pred_fallthru
    _
  // Predicated region
  $region22: #{_lambda_.8} parent=0 // pred_check
    _
  $region23: #{_lambda_.8} parent=0 // pred_check_branch
    %256 = sbr.rel (0) target = $region25
  $region24: #{_lambda_.8} parent=0 // pred_region
    _
  $region25: #{_lambda_.8} parent=0 // pred_fallthru
    _

// kernel: _lambda_.15
$region0: #{_lambda_.15}
  #allocation0 [shape = 'u32[]', space=smem, size = 0x4, offset = 0x4, fixed_abs, tag = 'smem constant byte address 0x4 - core index']
  #allocation1 [shape = 'u32[144,128]{1,0:T(1,128)}', space=vmem, size = 0x12000, scoped, tag = 'internal scratch']
  %s0 = inlined_call_operand.vmem [shape: bf16[40,32], index: 0, kind: input, shape index: {}]
  %s1 = inlined_call_operand.vmem [shape: f32[1,32], index: 1, kind: input, shape index: {}]
  %s2 = inlined_call_operand.vmem [shape: f32[1,32], index: 2, kind: input, shape index: {}]
  %s3 = inlined_call_operand.vmem [shape: f32[40,32], index: 3, kind: output, shape index: {}]
  %s4 = sld [smem:[#allocation0]]
  $region22: #{_lambda_.15} parent=0
    _
  %s6 = ssub.s32 1, %s4
  %s7 = scalar_select 0, %s6, %s4
  // Predicated region
  $region2: #{_lambda_.15} parent=0 // pred_check
    _
  $region3: #{_lambda_.15} parent=0 // pred_check_branch
    %9 = sbr.rel (0) target = $region5
  $region4: #{_lambda_.15} parent=0 // pred_region
    _
  $region5: #{_lambda_.15} parent=0 // pred_fallthru
    _
  // Predicated region
  $region6: #{_lambda_.15} parent=0 // pred_check
    _
  $region7: #{_lambda_.15} parent=0 // pred_check_branch
    %11 = sbr.rel (0) target = $region9
  $region8: #{_lambda_.15} parent=0 // pred_region
    _
  $region9: #{_lambda_.15} parent=0 // pred_fallthru
    _
  // Predicated region
  $region10: #{_lambda_.15} parent=0 // pred_check
    _
  $region11: #{_lambda_.15} parent=0 // pred_check_branch
    %13 = sbr.rel (0) target = $region13
  $region12: #{_lambda_.15} parent=0 // pred_region
    _
  $region13: #{_lambda_.15} parent=0 // pred_fallthru
    _
  %v14 = vld [vmem:[%s0] sm:$0xf]
  %v15 = vld [vmem:[%s0 + $0x4] sm:$0xf]
  %v16 = vld [vmem:[%s0 + $0x8] sm:$0xf]
  %v17 = vld [vmem:[%s0 + $0xc] sm:$0xf]
  %v18 = vld [vmem:[%s0 + $0x10] sm:$0xf]
  %v19 = vunpack.c.l.bf16 %v14
  %v20 = vunpack.c.l.bf16 %v15
  %v21 = vunpack.c.l.bf16 %v16
  %v22 = vunpack.c.l.bf16 %v17
  %v23 = vunpack.c.l.bf16 %v18
  %vm24 = vcmask 261120
  %v25 = vsel %vm24, %v19, 0.0
  %26 = vadd.xlane.f32.xlu0 %v25
  %v27 = vpop.xlane.xlu0 %26
  %v28 = vsel %vm24, %v20, 0.0
  %29 = vadd.xlane.f32.xlu0 %v28
  %v30 = vpop.xlane.xlu0 %29
  %v31 = vsel %vm24, %v21, 0.0
  %32 = vadd.xlane.f32.xlu0 %v31
  %v33 = vpop.xlane.xlu0 %32
  %v34 = vsel %vm24, %v22, 0.0
  %35 = vadd.xlane.f32.xlu0 %v34
  %v36 = vpop.xlane.xlu0 %35
  %v37 = vsel %vm24, %v23, 0.0
  %38 = vadd.xlane.f32.xlu0 %v37
  %v39 = vpop.xlane.xlu0 %38
  %v40 = vrcp.pop 32.0
  %v41 = vmul.f32 %v27, %v40
  %v42 = vmul.f32 %v30, %v40
  %v43 = vmul.f32 %v33, %v40
  %v44 = vmul.f32 %v36, %v40
  %v45 = vmul.f32 %v39, %v40
  %v46 = vsub.f32 %v19, %v41
  %v47 = vsub.f32 %v20, %v42
  %v48 = vsub.f32 %v21, %v43
  %v49 = vsub.f32 %v22, %v44
  %v50 = vsub.f32 %v23, %v45
  %v51 = vmul.f32 %v46, %v46
  %v52 = vmul.f32 %v47, %v47
  %v53 = vmul.f32 %v48, %v48
  %v54 = vmul.f32 %v49, %v49
  %v55 = vmul.f32 %v50, %v50
  %v56 = vsel %vm24, %v51, 0.0
  %57 = vadd.xlane.f32.xlu0 %v56
  %v58 = vpop.xlane.xlu0 %57
  %v59 = vsel %vm24, %v52, 0.0
  %60 = vadd.xlane.f32.xlu0 %v59
  %v61 = vpop.xlane.xlu0 %60
  %v62 = vsel %vm24, %v53, 0.0
  %63 = vadd.xlane.f32.xlu0 %v62
  %v64 = vpop.xlane.xlu0 %63
  %v65 = vsel %vm24, %v54, 0.0
  %66 = vadd.xlane.f32.xlu0 %v65
  %v67 = vpop.xlane.xlu0 %66
  %v68 = vsel %vm24, %v55, 0.0
  %69 = vadd.xlane.f32.xlu0 %v68
  %v70 = vpop.xlane.xlu0 %69
  %v71 = vmul.f32 %v58, %v40
  %v72 = vmul.f32 %v61, %v40
  %v73 = vmul.f32 %v64, %v40
  %v74 = vmul.f32 %v67, %v40
  %v75 = vmul.f32 %v70, %v40
  %v76 = vadd.f32 %v71, 1e-06
  %v77 = vadd.f32 %v72, 1e-06
  %v78 = vadd.f32 %v73, 1e-06
  %v79 = vadd.f32 %v74, 1e-06
  %v80 = vadd.f32 %v75, 1e-06
  %v81 = vrsqrt.pop %v76
  %v82 = vrsqrt.pop %v77
  %v83 = vrsqrt.pop %v78
  %v84 = vrsqrt.pop %v79
  %v85 = vrsqrt.pop %v80
  %v86 = vmul.f32 %v46, %v81
  %v87 = vmul.f32 %v47, %v82
  %v88 = vmul.f32 %v48, %v83
  %v89 = vmul.f32 %v49, %v84
  %v90 = vmul.f32 %v50, %v85
  %v91 = vld [vmem:[%s1] sm:$0x1]
  %v93 = vlaneseq
  %v94 = vshrl.u32 %v93, 7
  %v95 = vsub.s32 0, %v94
  %v96 = vrot.slane %v91, %v95
  %v98 = vmul.f32 %v86, %v96
  %v99 = vmul.f32 %v87, %v96
  %v100 = vmul.f32 %v88, %v96
  %v101 = vmul.f32 %v89, %v96
  %v102 = vmul.f32 %v90, %v96
  %v103 = vld [vmem:[%s2] sm:$0x1]
  %v105 = vlaneseq
  %v106 = vshrl.u32 %v105, 7
  %v107 = vsub.s32 0, %v106
  %v108 = vrot.slane %v103, %v107
  %v110 = vadd.f32 %v98, %v108
  %v111 = vadd.f32 %v99, %v108
  %v112 = vadd.f32 %v100, %v108
  %v113 = vadd.f32 %v101, %v108
  %v114 = vadd.f32 %v102, %v108
  %115 = vst.msk [vmem:[%s3] sm:$0xff] %vm24, %v110
  %116 = vst.msk [vmem:[%s3 + $0x8] sm:$0xff] %vm24, %v111
  %117 = vst.msk [vmem:[%s3 + $0x10] sm:$0xff] %vm24, %v112
  %118 = vst.msk [vmem:[%s3 + $0x18] sm:$0xff] %vm24, %v113
  %119 = vst.msk [vmem:[%s3 + $0x20] sm:$0xff] %vm24, %v114
  // Predicated region
  $region14: #{_lambda_.15} parent=0 // pred_check
    _
  $region15: #{_lambda_.15} parent=0 // pred_check_branch
    %121 = sbr.rel (0) target = $region17
  $region16: #{_lambda_.15} parent=0 // pred_region
    _
  $region17: #{_lambda_.15} parent=0 // pred_fallthru
    _
  // Predicated region
  $region18: #{_lambda_.15} parent=0 // pred_check
    _
  $region19: #{_lambda_.15} parent=0 // pred_check_branch
    %123 = sbr.rel (0) target = $region21
  $region20: #{_lambda_.15} parent=0 // pred_region
    _
  $region21: #{_lambda_.15} parent=0 // pred_fallthru
    _

// kernel: _lambda_.11
$region0: #{_lambda_.11}
  #allocation0 [shape = 'u32[]', space=smem, size = 0x4, offset = 0x4, fixed_abs, tag = 'smem constant byte address 0x4 - core index']
  #allocation1 [shape = 'u32[144,128]{1,0:T(1,128)}', space=vmem, size = 0x12000, scoped, tag = 'internal scratch']
  %s0 = inlined_call_operand.vmem [shape: bf16[40,32], index: 0, kind: input, shape index: {}]
  %s1 = inlined_call_operand.vmem [shape: f32[1,32], index: 1, kind: input, shape index: {}]
  %s2 = inlined_call_operand.vmem [shape: f32[1,32], index: 2, kind: input, shape index: {}]
  %s3 = inlined_call_operand.vmem [shape: bf16[32,64], index: 3, kind: input, shape index: {}]
  %s4 = inlined_call_operand.vmem [shape: f32[1,64], index: 4, kind: input, shape index: {}]
  %s5 = inlined_call_operand.vmem [shape: bf16[64,32], index: 5, kind: input, shape index: {}]
  %s6 = inlined_call_operand.vmem [shape: f32[1,32], index: 6, kind: input, shape index: {}]
  %s7 = inlined_call_operand.vmem [shape: bf16[40,32], index: 7, kind: output, shape index: {}]
  %s8 = sld [smem:[#allocation0]]
  $region38: #{_lambda_.11} parent=0
    _
  %s10 = ssub.s32 1, %s8
  %s11 = scalar_select 0, %s10, %s8
  // Predicated region
  $region2: #{_lambda_.11} parent=0 // pred_check
    _
  $region3: #{_lambda_.11} parent=0 // pred_check_branch
    %13 = sbr.rel (0) target = $region5
  $region4: #{_lambda_.11} parent=0 // pred_region
    _
  $region5: #{_lambda_.11} parent=0 // pred_fallthru
    _
  // Predicated region
  $region6: #{_lambda_.11} parent=0 // pred_check
    _
  $region7: #{_lambda_.11} parent=0 // pred_check_branch
    %15 = sbr.rel (0) target = $region9
  $region8: #{_lambda_.11} parent=0 // pred_region
    _
  $region9: #{_lambda_.11} parent=0 // pred_fallthru
    _
  // Predicated region
  $region10: #{_lambda_.11} parent=0 // pred_check
    _
  $region11: #{_lambda_.11} parent=0 // pred_check_branch
    %17 = sbr.rel (0) target = $region13
  $region12: #{_lambda_.11} parent=0 // pred_region
    _
  $region13: #{_lambda_.11} parent=0 // pred_fallthru
    _
  // Predicated region
  $region14: #{_lambda_.11} parent=0 // pred_check
    _
  $region15: #{_lambda_.11} parent=0 // pred_check_branch
    %19 = sbr.rel (0) target = $region17
  $region16: #{_lambda_.11} parent=0 // pred_region
    _
  $region17: #{_lambda_.11} parent=0 // pred_fallthru
    _
  // Predicated region
  $region18: #{_lambda_.11} parent=0 // pred_check
    _
  $region19: #{_lambda_.11} parent=0 // pred_check_branch
    %21 = sbr.rel (0) target = $region21
  $region20: #{_lambda_.11} parent=0 // pred_region
    _
  $region21: #{_lambda_.11} parent=0 // pred_fallthru
    _
  // Predicated region
  $region22: #{_lambda_.11} parent=0 // pred_check
    _
  $region23: #{_lambda_.11} parent=0 // pred_check_branch
    %23 = sbr.rel (0) target = $region25
  $region24: #{_lambda_.11} parent=0 // pred_region
    _
  $region25: #{_lambda_.11} parent=0 // pred_fallthru
    _
  // Predicated region
  $region26: #{_lambda_.11} parent=0 // pred_check
    _
  $region27: #{_lambda_.11} parent=0 // pred_check_branch
    %25 = sbr.rel (0) target = $region29
  $region28: #{_lambda_.11} parent=0 // pred_region
    _
  $region29: #{_lambda_.11} parent=0 // pred_fallthru
    _
  %v27 = vld [vmem:[%s0] sm:$0xf]
  %v28 = vld [vmem:[%s0 + $0x4] sm:$0xf]
  %v29 = vld [vmem:[%s0 + $0x8] sm:$0xf]
  %v30 = vld [vmem:[%s0 + $0xc] sm:$0xf]
  %v31 = vld [vmem:[%s0 + $0x10] sm:$0xf]
  %v32 = vunpack.c.l.bf16 %v27
  %v33 = vunpack.c.l.bf16 %v28
  %v34 = vunpack.c.l.bf16 %v29
  %v35 = vunpack.c.l.bf16 %v30
  %v36 = vunpack.c.l.bf16 %v31
  %vm37 = vcmask 261120
  %v38 = vsel %vm37, %v32, 0.0
  %39 = vadd.xlane.f32.xlu0 %v38
  %v40 = vpop.xlane.xlu0 %39
  %v41 = vsel %vm37, %v33, 0.0
  %42 = vadd.xlane.f32.xlu0 %v41
  %v43 = vpop.xlane.xlu0 %42
  %v44 = vsel %vm37, %v34, 0.0
  %45 = vadd.xlane.f32.xlu0 %v44
  %v46 = vpop.xlane.xlu0 %45
  %v47 = vsel %vm37, %v35, 0.0
  %48 = vadd.xlane.f32.xlu0 %v47
  %v49 = vpop.xlane.xlu0 %48
  %v50 = vsel %vm37, %v36, 0.0
  %51 = vadd.xlane.f32.xlu0 %v50
  %v52 = vpop.xlane.xlu0 %51
  %v53 = vrcp.pop 32.0
  %v54 = vmul.f32 %v40, %v53
  %v55 = vmul.f32 %v43, %v53
  %v56 = vmul.f32 %v46, %v53
  %v57 = vmul.f32 %v49, %v53
  %v58 = vmul.f32 %v52, %v53
  %v59 = vsub.f32 %v32, %v54
  %v60 = vsub.f32 %v33, %v55
  %v61 = vsub.f32 %v34, %v56
  %v62 = vsub.f32 %v35, %v57
  %v63 = vsub.f32 %v36, %v58
  %v64 = vmul.f32 %v59, %v59
  %v65 = vmul.f32 %v60, %v60
  %v66 = vmul.f32 %v61, %v61
  %v67 = vmul.f32 %v62, %v62
  %v68 = vmul.f32 %v63, %v63
  %v69 = vsel %vm37, %v64, 0.0
  %70 = vadd.xlane.f32.xlu0 %v69
  %v71 = vpop.xlane.xlu0 %70
  %v72 = vsel %vm37, %v65, 0.0
  %73 = vadd.xlane.f32.xlu0 %v72
  %v74 = vpop.xlane.xlu0 %73
  %v75 = vsel %vm37, %v66, 0.0
  %76 = vadd.xlane.f32.xlu0 %v75
  %v77 = vpop.xlane.xlu0 %76
  %v78 = vsel %vm37, %v67, 0.0
  %79 = vadd.xlane.f32.xlu0 %v78
  %v80 = vpop.xlane.xlu0 %79
  %v81 = vsel %vm37, %v68, 0.0
  %82 = vadd.xlane.f32.xlu0 %v81
  %v83 = vpop.xlane.xlu0 %82
  %v84 = vmul.f32 %v71, %v53
  %v85 = vmul.f32 %v74, %v53
  %v86 = vmul.f32 %v77, %v53
  %v87 = vmul.f32 %v80, %v53
  %v88 = vmul.f32 %v83, %v53
  %v89 = vadd.f32 %v84, 1e-06
  %v90 = vadd.f32 %v85, 1e-06
  %v91 = vadd.f32 %v86, 1e-06
  %v92 = vadd.f32 %v87, 1e-06
  %v93 = vadd.f32 %v88, 1e-06
  %v94 = vrsqrt.pop %v89
  %v95 = vrsqrt.pop %v90
  %v96 = vrsqrt.pop %v91
  %v97 = vrsqrt.pop %v92
  %v98 = vrsqrt.pop %v93
  %v99 = vmul.f32 %v59, %v94
  %v100 = vmul.f32 %v60, %v95
  %v101 = vmul.f32 %v61, %v96
  %v102 = vmul.f32 %v62, %v97
  %v103 = vmul.f32 %v63, %v98
  %v104 = vld [vmem:[%s1] sm:$0x1]
  %v106 = vlaneseq
  %v107 = vshrl.u32 %v106, 7
  %v108 = vsub.s32 0, %v107
  %v109 = vrot.slane %v104, %v108
  %v111 = vmul.f32 %v99, %v109
  %v112 = vmul.f32 %v100, %v109
  %v113 = vmul.f32 %v101, %v109
  %v114 = vmul.f32 %v102, %v109
  %v115 = vmul.f32 %v103, %v109
  %v116 = vld [vmem:[%s2] sm:$0x1]
  %v118 = vlaneseq
  %v119 = vshrl.u32 %v118, 7
  %v120 = vsub.s32 0, %v119
  %v121 = vrot.slane %v116, %v120
  %v123 = vadd.f32 %v111, %v121
  %v124 = vadd.f32 %v112, %v121
  %v125 = vadd.f32 %v113, %v121
  %v126 = vadd.f32 %v114, %v121
  %v127 = vadd.f32 %v115, %v121
  %v128 = vpack.c.bf16 %v124, %v123
  %v129 = vpack.c.bf16 %v126, %v125
  %v130 = vpack.c.bf16 %v127, %v127
  %v131 = vld [vmem:[%s3] sm:$0xf]
  %v132 = vld [vmem:[%s3 + $0x4] sm:$0xf]
  %v133 = vld [vmem:[%s3 + $0x8] sm:$0xf]
  %v134 = vld [vmem:[%s3 + $0xc] sm:$0xf]
  %v135 = vld [vmem:[%s4] sm:$0x1]
  %v137 = vlaneseq
  %v138 = vshrl.u32 %v137, 7
  %v139 = vsub.s32 0, %v138
  %v140 = vrot.slane %v135, %v139
  %v146 = vunpack.c.l.b16 %v131
  %v147 = vunpack.c.l.b16 %v132
  %v148 = vunpack.c.l.b16 %v133
  %v149 = vunpack.c.l.b16 %v134
  %v150 = vpack.c.b16 %v147, %v146
  %v151 = vpack.c.b16 %v149, %v148
  %v155 = vsel %vm37, %v128, 0
  %v158 = vsel %vm37, %v129, 0
  %v161 = vsel %vm37, %v130, 0
  %163 = vmatprep.subr.bf16.mxu0 0
  %164 = vmatpush1.bf16.msra.mxu0 0
  %165 = vmatprep.subr.bf16.mxu0 0
  %166 = vmatpush1.bf16.msra.mxu0 0
  %167 = vmatprep.subr.bf16.mxu0 0
  %168 = vmatpush1.bf16.msra.mxu0 0
  %169 = vmatprep.subr.bf16.mxu0 0
  %170 = vmatpush1.bf16.msra.mxu0 0
  %171 = vmatprep.subr.bf16.mxu0 0
  %172 = vmatpush1.bf16.msra.mxu0 0
  %173 = vmatprep.subr.bf16.mxu0 0
  %174 = vmatpush1.bf16.msra.mxu0 0
  %175 = vmatprep.subr.bf16.mxu0 0
  %176 = vmatpush1.bf16.msra.mxu0 %v151
  %177 = vmatprep.subr.bf16.mxu0 0
  %178 = vmatpush1.bf16.msra.mxu0 %v150
  %179 = vmatprep.subr.bf16.mxu0 0
  %180 = vmatpush2.bf16.msra.mxu0 0
  %181 = vmatprep.subr.bf16.mxu0 0
  %182 = vmatpush2.bf16.msra.mxu0 0
  %183 = vmatprep.subr.bf16.mxu0 0
  %184 = vmatpush2.bf16.msra.mxu0 0
  %185 = vmatprep.subr.bf16.mxu0 0
  %186 = vmatpush2.bf16.msra.mxu0 0
  %187 = vmatprep.subr.bf16.mxu0 0
  %188 = vmatpush2.bf16.msra.mxu0 0
  %189 = vmatprep.subr.bf16.mxu0 0
  %190 = vmatpush2.bf16.msra.mxu0 0
  %191 = vmatprep.subr.bf16.mxu0 0
  %192 = vmatpush2.bf16.msra.mxu0 0
  %193 = vmatprep.subr.bf16.mxu0 0
  %194 = vmatpush2.bf16.msra.mxu0 0
  %195 = vmatprep.mubr.bf16.mxu0 0
  %196 = vmatmul.mubr.bf16.gmra.mxu0 %v155
  %v197 = vpop.f32.mrf.mxu0
  %v198 = vadd.f32 %v140, %v197
  %v199 = vpop.f32.mrf.mxu0
  %v200 = vpop.f32.mrf.mxu0
  %v201 = vadd.f32 %v140, %v200
  %v202 = vpop.f32.mrf.mxu0
  %203 = vmatprep.mubr.bf16.mxu0 0
  %204 = vmatmul.mubr.bf16.gmra.mxu0 %v158
  %v205 = vpop.f32.mrf.mxu0
  %v206 = vadd.f32 %v140, %v205
  %v207 = vpop.f32.mrf.mxu0
  %v208 = vpop.f32.mrf.mxu0
  %v209 = vadd.f32 %v140, %v208
  %v210 = vpop.f32.mrf.mxu0
  %211 = vmatprep.mubr.bf16.mxu0 0
  %212 = vmatmul.mubr.bf16.gmra.mxu0 %v161
  %v213 = vpop.f32.mrf.mxu0
  %v214 = vadd.f32 %v140, %v213
  %v215 = vpop.f32.mrf.mxu0
  %v216 = vpop.f32.mrf.mxu0
  %v217 = vpop.f32.mrf.mxu0
  %218 = vdwg.mxu0
  %v219 = vmul.f32 %v198, 0.5
  %v220 = vmul.f32 %v201, 0.5
  %v221 = vmul.f32 %v206, 0.5
  %v222 = vmul.f32 %v209, 0.5
  %v223 = vmul.f32 %v214, 0.5
  %v224 = vmul.f32 %v198, 0.044715
  %v225 = vmul.f32 %v201, 0.044715
  %v226 = vmul.f32 %v206, 0.044715
  %v227 = vmul.f32 %v209, 0.044715
  %v228 = vmul.f32 %v214, 0.044715
  %v229 = vmul.f32 %v224, %v198
  %v230 = vmul.f32 %v225, %v201
  %v231 = vmul.f32 %v226, %v206
  %v232 = vmul.f32 %v227, %v209
  %v233 = vmul.f32 %v228, %v214
  %v234 = vmul.f32 %v229, %v198
  %v235 = vmul.f32 %v230, %v201
  %v236 = vmul.f32 %v231, %v206
  %v237 = vmul.f32 %v232, %v209
  %v238 = vmul.f32 %v233, %v214
  %v239 = vadd.f32 %v198, %v234
  %v240 = vadd.f32 %v201, %v235
  %v241 = vadd.f32 %v206, %v236
  %v242 = vadd.f32 %v209, %v237
  %v243 = vadd.f32 %v214, %v238
  %v244 = vmul.f32 %v239, 0.7978846
  %v245 = vmul.f32 %v240, 0.7978846
  %v246 = vmul.f32 %v241, 0.7978846
  %v247 = vmul.f32 %v242, 0.7978846
  %v248 = vmul.f32 %v243, 0.7978846
  %v249 = vtanh.pop %v244
  %v250 = vtanh.pop %v245
  %v251 = vtanh.pop %v246
  %v252 = vtanh.pop %v247
  %v253 = vtanh.pop %v248
  %v254 = vadd.f32 %v249, 1.0
  %v255 = vadd.f32 %v250, 1.0
  %v256 = vadd.f32 %v251, 1.0
  %v257 = vadd.f32 %v252, 1.0
  %v258 = vadd.f32 %v253, 1.0
  %v259 = vmul.f32 %v219, %v254
  %v260 = vmul.f32 %v220, %v255
  %v261 = vmul.f32 %v221, %v256
  %v262 = vmul.f32 %v222, %v257
  %v263 = vmul.f32 %v223, %v258
  %v264 = vpack.c.bf16 %v260, %v259
  %v265 = vpack.c.bf16 %v262, %v261
  %v266 = vpack.c.bf16 %v263, %v263
  %v267 = vld [vmem:[%s5] sm:$0xf]
  %v268 = vld [vmem:[%s5 + $0x4] sm:$0xf]
  %v269 = vld [vmem:[%s5 + $0x8] sm:$0xf]
  %v270 = vld [vmem:[%s5 + $0xc] sm:$0xf]
  %v271 = vld [vmem:[%s5 + $0x10] sm:$0xf]
  %v272 = vld [vmem:[%s5 + $0x14] sm:$0xf]
  %v273 = vld [vmem:[%s5 + $0x18] sm:$0xf]
  %v274 = vld [vmem:[%s5 + $0x1c] sm:$0xf]
  %v275 = vld [vmem:[%s6] sm:$0x1]
  %v277 = vlaneseq
  %v278 = vshrl.u32 %v277, 7
  %v279 = vsub.s32 0, %v278
  %v280 = vrot.slane %v275, %v279
  %v290 = vunpack.c.l.b16 %v267
  %v291 = vunpack.c.l.b16 %v268
  %v292 = vunpack.c.l.b16 %v269
  %v293 = vunpack.c.l.b16 %v270
  %v294 = vunpack.c.l.b16 %v271
  %v295 = vunpack.c.l.b16 %v272
  %v296 = vunpack.c.l.b16 %v273
  %v297 = vunpack.c.l.b16 %v274
  %v298 = vpack.c.b16 %v291, %v290
  %v299 = vpack.c.b16 %v293, %v292
  %v300 = vpack.c.b16 %v295, %v294
  %v301 = vpack.c.b16 %v297, %v296
  %vm306 = vcmask 523264
  %v308 = vsel %vm306, %v264, 0
  %v311 = vsel %vm306, %v265, 0
  %v314 = vsel %vm306, %v266, 0
  %316 = vmatprep.subr.bf16.mxu0 0
  %317 = vmatpush1.bf16.msra.mxu0 0
  %318 = vmatprep.subr.bf16.mxu0 0
  %319 = vmatpush1.bf16.msra.mxu0 0
  %320 = vmatprep.subr.bf16.mxu0 0
  %321 = vmatpush1.bf16.msra.mxu0 0
  %322 = vmatprep.subr.bf16.mxu0 0
  %323 = vmatpush1.bf16.msra.mxu0 0
  %324 = vmatprep.subr.bf16.mxu0 0
  %325 = vmatpush1.bf16.msra.mxu0 %v301
  %326 = vmatprep.subr.bf16.mxu0 0
  %327 = vmatpush1.bf16.msra.mxu0 %v300
  %328 = vmatprep.subr.bf16.mxu0 0
  %329 = vmatpush1.bf16.msra.mxu0 %v299
  %330 = vmatprep.subr.bf16.mxu0 0
  %331 = vmatpush1.bf16.msra.mxu0 %v298
  %332 = vmatprep.subr.bf16.mxu0 0
  %333 = vmatpush2.bf16.msra.mxu0 0
  %334 = vmatprep.subr.bf16.mxu0 0
  %335 = vmatpush2.bf16.msra.mxu0 0
  %336 = vmatprep.subr.bf16.mxu0 0
  %337 = vmatpush2.bf16.msra.mxu0 0
  %338 = vmatprep.subr.bf16.mxu0 0
  %339 = vmatpush2.bf16.msra.mxu0 0
  %340 = vmatprep.subr.bf16.mxu0 0
  %341 = vmatpush2.bf16.msra.mxu0 0
  %342 = vmatprep.subr.bf16.mxu0 0
  %343 = vmatpush2.bf16.msra.mxu0 0
  %344 = vmatprep.subr.bf16.mxu0 0
  %345 = vmatpush2.bf16.msra.mxu0 0
  %346 = vmatprep.subr.bf16.mxu0 0
  %347 = vmatpush2.bf16.msra.mxu0 0
  %348 = vmatprep.mubr.bf16.mxu0 0
  %349 = vmatmul.mubr.bf16.gmra.mxu0 %v308
  %v350 = vpop.f32.mrf.mxu0
  %v351 = vadd.f32 %v280, %v350
  %v352 = vpop.f32.mrf.mxu0
  %v353 = vpop.f32.mrf.mxu0
  %v354 = vadd.f32 %v280, %v353
  %v355 = vpop.f32.mrf.mxu0
  %356 = vmatprep.mubr.bf16.mxu0 0
  %357 = vmatmul.mubr.bf16.gmra.mxu0 %v311
  %v358 = vpop.f32.mrf.mxu0
  %v359 = vadd.f32 %v280, %v358
  %v360 = vpop.f32.mrf.mxu0
  %v361 = vpop.f32.mrf.mxu0
  %v362 = vadd.f32 %v280, %v361
  %v363 = vpop.f32.mrf.mxu0
  %364 = vmatprep.mubr.bf16.mxu0 0
  %365 = vmatmul.mubr.bf16.gmra.mxu0 %v314
  %v366 = vpop.f32.mrf.mxu0
  %v367 = vadd.f32 %v280, %v366
  %v368 = vpop.f32.mrf.mxu0
  %v369 = vpop.f32.mrf.mxu0
  %v370 = vpop.f32.mrf.mxu0
  %371 = vdwg.mxu0
  %v372 = vadd.f32 %v351, %v32
  %v373 = vadd.f32 %v354, %v33
  %v374 = vadd.f32 %v359, %v34
  %v375 = vadd.f32 %v362, %v35
  %v376 = vadd.f32 %v367, %v36
  %v377 = vpack.c.bf16 %v373, %v372
  %v378 = vpack.c.bf16 %v375, %v374
  %v379 = vpack.c.bf16 %v376, %v376
  %v383 = vunpack.c.l.b16 %v377
  %v384 = vunpack.c.h.b16 %v377
  %v385 = vunpack.c.l.b16 %v378
  %v386 = vunpack.c.h.b16 %v378
  %v387 = vunpack.c.l.b16 %v379
  %v388 = vpack.c.b16 %v383, %v383
  %v389 = vpack.c.b16 %v384, %v384
  %v390 = vpack.c.b16 %v385, %v385
  %v391 = vpack.c.b16 %v386, %v386
  %v392 = vpack.c.b16 %v387, %v387
  %vm398 = vcmask 257024
  %399 = vst.msk [vmem:[%s7] sm:$0xf] %vm398, %v388
  %400 = vst.msk [vmem:[%s7 + $0x4] sm:$0xf] %vm398, %v389
  %401 = vst.msk [vmem:[%s7 + $0x8] sm:$0xf] %vm398, %v390
  %402 = vst.msk [vmem:[%s7 + $0xc] sm:$0xf] %vm398, %v391
  %403 = vst.msk [vmem:[%s7 + $0x10] sm:$0xf] %vm398, %v392
  // Predicated region
  $region30: #{_lambda_.11} parent=0 // pred_check
    _
  $region31: #{_lambda_.11} parent=0 // pred_check_branch
    %405 = sbr.rel (0) target = $region33
  $region32: #{_lambda_.11} parent=0 // pred_region
    _
  $region33: #{_lambda_.11} parent=0 // pred_fallthru
    _
  // Predicated region
  $region34: #{_lambda_.11} parent=0 // pred_check
    _
  $region35: #{_lambda_.11} parent=0 // pred_check_branch
    %407 = sbr.rel (0) target = $region37
  $region36: #{_lambda_.11} parent=0 // pred_region
    _
  $region37: #{_lambda_.11} parent=0 // pred_fallthru
    _

// kernel: _lambda_.10
$region0: #{_lambda_.10}
  #allocation0 [shape = 'u32[]', space=smem, size = 0x4, offset = 0x4, fixed_abs, tag = 'smem constant byte address 0x4 - core index']
  #allocation1 [shape = 'u32[144,128]{1,0:T(1,128)}', space=vmem, size = 0x12000, scoped, tag = 'internal scratch']
  #allocation2 [shape = 'f32[4,32]{1,0:T(4,128)}', space=vmem, size = 0x800, scoped, tag = 'scratch operand']
  %s0 = inlined_call_operand.vmem [shape: bf16[10,4,4,8], index: 0, kind: input, shape index: {}]
  %s1 = inlined_call_operand.vmem [shape: bf16[10,4,4,8], index: 1, kind: input, shape index: {}]
  %s2 = inlined_call_operand.vmem [shape: bf16[10,4,4,8], index: 2, kind: input, shape index: {}]
  %s3 = inlined_call_operand.vmem [shape: bf16[10,4,32], index: 3, kind: input, shape index: {}]
  %s4 = inlined_call_operand.vmem [shape: bf16[4,8,32], index: 4, kind: input, shape index: {}]
  %s5 = inlined_call_operand.vmem [shape: f32[1,32], index: 5, kind: input, shape index: {}]
  %s6 = inlined_call_operand.vmem [shape: bf16[10,4,32], index: 6, kind: output, shape index: {}]
  %s7 = sld [smem:[#allocation0]]
  $region65: #{_lambda_.10} parent=0
    _
  %s9 = ssub.s32 1, %s7
  %s10 = scalar_select 0, %s9, %s7
  loop: start=0, step=1, limit=42
  $region2: #{_lambda_.10} parent=0 // loop_pre_header
    _
  $region3: #{_lambda_.10} parent=0 // loop_header
    %s12 = sphi 0, %s16
    %p13 = scmp.ge.s32.totalorder %s12, 42
    %s19 = sphi 0, %s31
    %s20 = sphi 0, %s27
    %s21 = sphi 0, %s19
    %s22 = sphi 0, %s20
    %s23 = sphi 0, %s21
    %s24 = sphi 0, %s22
    %s36 = sphi 0, %s38
    %s39 = sphi 0, %s36
    %s40 = sphi 0, %s39
    %s56 = sphi 0, %s40
    %s64 = sphi 0, %s66
    %s67 = sphi 0, %s64
    %s68 = sphi 0, %s67
    %s84 = sphi 0, %s68
    %s92 = sphi 0, %s94
    %s95 = sphi 0, %s92
    %s96 = sphi 0, %s95
    %s112 = sphi 0, %s96
    %s118 = sphi 0, %s120
    %s121 = sphi 0, %s118
    %s122 = sphi 0, %s121
    %s138 = sphi 0, %s122
    %s144 = sphi 0, %s146
    %s147 = sphi 0, %s144
    %s148 = sphi 0, %s147
    %s164 = sphi 0, %s148
    %s168 = sphi 0, %s168
    %s170 = sphi 0, %s168
    %s171 = sphi 0, %s170
    %s185 = sphi 0, %s171
    %s191 = sphi 0, %s193
    %s194 = sphi 0, %s191
    %s195 = sphi 0, %s194
    %s211 = sphi 0, %s195
  $region4: #{_lambda_.10} parent=0 // loop_header_branch
    %15 = sbr.rel (%p13) target = $region8
  $region5: #{_lambda_.10} parent=0 // loop_body
    %s17 = ssub.s32 %s12, 1
    %s18 = ssub.s32 %s12, 2
    %s25 = sadd.s32 1, %s20
    %p26 = scmp.ge.s32.totalorder %s25, 4
    %s27 = scalar_select %p26, 0, %s25
    %s28 = sadd.s32 1, %s19
    %s29 = scalar_select %p26, %s28, %s19
    %p30 = scmp.ge.s32.totalorder %s29, 10
    %s31 = scalar_select %p30, 0, %s29
    %s32 = ssub.s32 %s19, %s31
    %s33 = ssub.s32 %s20, %s27
    %s34 = sor.u32 %s32, %s33
    %p35 = scmp.eq.s32.totalorder %s34, 0
    %s37 = sadd.s32 %s36, 1
    %s38 = scalar_select %p35, %s36, %s37
    %p41 = pneg %p35
    %p42 = scmp.eq.s32.totalorder %s12, 39
    %p43 = por %p41, %p42
    %p44 = scmp.ne.s32.totalorder %s36, %s39
    %p45 = scmp.eq.s32.totalorder %s12, 0
    %p46 = por %p44, %p45
    %p47 = scmp.ne.s32.totalorder %s36, %s39
    %p48 = scmp.eq.s32.totalorder %s17, 39
    %p49 = por %p47, %p48
    %p50 = scmp.ne.s32.totalorder %s39, %s40
    %p51 = scmp.eq.s32.totalorder %s17, 0
    %p52 = por %p50, %p51
    %p53 = scmp.ne.s32.totalorder %s39, %s40
    %p54 = scmp.eq.s32.totalorder %s18, 39
    %p55 = por %p53, %p54
    %p57 = scmp.ne.s32.totalorder %s40, %s56
    %p58 = scmp.eq.s32.totalorder %s18, 0
    %p59 = por %p57, %p58
    %s60 = ssub.s32 %s19, %s31
    %s61 = ssub.s32 %s20, %s27
    %s62 = sor.u32 %s60, %s61
    %p63 = scmp.eq.s32.totalorder %s62, 0
    %s65 = sadd.s32 %s64, 1
    %s66 = scalar_select %p63, %s64, %s65
    %p69 = pneg %p63
    %p70 = scmp.eq.s32.totalorder %s12, 39
    %p71 = por %p69, %p70
    %p72 = scmp.ne.s32.totalorder %s64, %s67
    %p73 = scmp.eq.s32.totalorder %s12, 0
    %p74 = por %p72, %p73
    %p75 = scmp.ne.s32.totalorder %s64, %s67
    %p76 = scmp.eq.s32.totalorder %s17, 39
    %p77 = por %p75, %p76
    %p78 = scmp.ne.s32.totalorder %s67, %s68
    %p79 = scmp.eq.s32.totalorder %s17, 0
    %p80 = por %p78, %p79
    %p81 = scmp.ne.s32.totalorder %s67, %s68
    %p82 = scmp.eq.s32.totalorder %s18, 39
    %p83 = por %p81, %p82
    %p85 = scmp.ne.s32.totalorder %s68, %s84
    %p86 = scmp.eq.s32.totalorder %s18, 0
    %p87 = por %p85, %p86
    %s88 = ssub.s32 %s19, %s31
    %s89 = ssub.s32 %s20, %s27
    %s90 = sor.u32 %s88, %s89
    %p91 = scmp.eq.s32.totalorder %s90, 0
    %s93 = sadd.s32 %s92, 1
    %s94 = scalar_select %p91, %s92, %s93
    %p97 = pneg %p91
    %p98 = scmp.eq.s32.totalorder %s12, 39
    %p99 = por %p97, %p98
    %p100 = scmp.ne.s32.totalorder %s92, %s95
    %p101 = scmp.eq.s32.totalorder %s12, 0
    %p102 = por %p100, %p101
    %p103 = scmp.ne.s32.totalorder %s92, %s95
    %p104 = scmp.eq.s32.totalorder %s17, 39
    %p105 = por %p103, %p104
    %p106 = scmp.ne.s32.totalorder %s95, %s96
    %p107 = scmp.eq.s32.totalorder %s17, 0
    %p108 = por %p106, %p107
    %p109 = scmp.ne.s32.totalorder %s95, %s96
    %p110 = scmp.eq.s32.totalorder %s18, 39
    %p111 = por %p109, %p110
    %p113 = scmp.ne.s32.totalorder %s96, %s112
    %p114 = scmp.eq.s32.totalorder %s18, 0
    %p115 = por %p113, %p114
    %s116 = ssub.s32 %s19, %s31
    %p117 = scmp.eq.s32.totalorder %s116, 0
    %s119 = sadd.s32 %s118, 1
    %s120 = scalar_select %p117, %s118, %s119
    %p123 = pneg %p117
    %p124 = scmp.eq.s32.totalorder %s12, 39
    %p125 = por %p123, %p124
    %p126 = scmp.ne.s32.totalorder %s118, %s121
    %p127 = scmp.eq.s32.totalorder %s12, 0
    %p128 = por %p126, %p127
    %p129 = scmp.ne.s32.totalorder %s118, %s121
    %p130 = scmp.eq.s32.totalorder %s17, 39
    %p131 = por %p129, %p130
    %p132 = scmp.ne.s32.totalorder %s121, %s122
    %p133 = scmp.eq.s32.totalorder %s17, 0
    %p134 = por %p132, %p133
    %p135 = scmp.ne.s32.totalorder %s121, %s122
    %p136 = scmp.eq.s32.totalorder %s18, 39
    %p137 = por %p135, %p136
    %p139 = scmp.ne.s32.totalorder %s122, %s138
    %p140 = scmp.eq.s32.totalorder %s18, 0
    %p141 = por %p139, %p140
    %s142 = ssub.s32 %s20, %s27
    %p143 = scmp.eq.s32.totalorder %s142, 0
    %s145 = sadd.s32 %s144, 1
    %s146 = scalar_select %p143, %s144, %s145
    %p149 = pneg %p143
    %p150 = scmp.eq.s32.totalorder %s12, 39
    %p151 = por %p149, %p150
    %p152 = scmp.ne.s32.totalorder %s144, %s147
    %p153 = scmp.eq.s32.totalorder %s12, 0
    %p154 = por %p152, %p153
    %p155 = scmp.ne.s32.totalorder %s144, %s147
    %p156 = scmp.eq.s32.totalorder %s17, 39
    %p157 = por %p155, %p156
    %p158 = scmp.ne.s32.totalorder %s147, %s148
    %p159 = scmp.eq.s32.totalorder %s17, 0
    %p160 = por %p158, %p159
    %p161 = scmp.ne.s32.totalorder %s147, %s148
    %p162 = scmp.eq.s32.totalorder %s18, 39
    %p163 = por %p161, %p162
    %p165 = scmp.ne.s32.totalorder %s148, %s164
    %p166 = scmp.eq.s32.totalorder %s18, 0
    %p167 = por %p165, %p166
    %s169 = sadd.s32 %s168, 1
    %p172 = scmp.eq.s32.totalorder %s12, 39
    %p173 = scmp.ne.s32.totalorder %s168, %s170
    %p174 = scmp.eq.s32.totalorder %s12, 0
    %p175 = por %p173, %p174
    %p176 = scmp.ne.s32.totalorder %s168, %s170
    %p177 = scmp.eq.s32.totalorder %s17, 39
    %p178 = por %p176, %p177
    %p179 = scmp.ne.s32.totalorder %s170, %s171
    %p180 = scmp.eq.s32.totalorder %s17, 0
    %p181 = por %p179, %p180
    %p182 = scmp.ne.s32.totalorder %s170, %s171
    %p183 = scmp.eq.s32.totalorder %s18, 39
    %p184 = por %p182, %p183
    %p186 = scmp.ne.s32.totalorder %s171, %s185
    %p187 = scmp.eq.s32.totalorder %s18, 0
    %p188 = por %p186, %p187
    %s189 = ssub.s32 %s19, %s31
    %p190 = scmp.eq.s32.totalorder %s189, 0
    %s192 = sadd.s32 %s191, 1
    %s193 = scalar_select %p190, %s191, %s192
    %p196 = pneg %p190
    %p197 = scmp.eq.s32.totalorder %s12, 39
    %p198 = por %p196, %p197
    %p199 = scmp.ne.s32.totalorder %s191, %s194
    %p200 = scmp.eq.s32.totalorder %s12, 0
    %p201 = por %p199, %p200
    %p202 = scmp.ne.s32.totalorder %s191, %s194
    %p203 = scmp.eq.s32.totalorder %s17, 39
    %p204 = por %p202, %p203
    %p205 = scmp.ne.s32.totalorder %s194, %s195
    %p206 = scmp.eq.s32.totalorder %s17, 0
    %p207 = por %p205, %p206
    %p208 = scmp.ne.s32.totalorder %s194, %s195
    %p209 = scmp.eq.s32.totalorder %s18, 39
    %p210 = por %p208, %p209
    %p212 = scmp.ne.s32.totalorder %s195, %s211
    %p213 = scmp.eq.s32.totalorder %s18, 0
    %p214 = por %p212, %p213
    %p215 = scmp.le.s32.totalorder 1, %s12
    %p216 = scmp.lt.s32.totalorder %s12, 41
    %p217 = pnand %p215, %p216
    %p218 = pneg %p217
    // Predicated region
    $region9: #{_lambda_.10} parent=5 // pred_check
      _
    $region10: #{_lambda_.10} parent=5 // pred_check_branch
      %220 = sbr.rel (%p217) target = $region12
    $region11: #{_lambda_.10} parent=5 // pred_region
      %s221 = ssub.s32 %s12, 1
      // Predicated region
      $region13: #{_lambda_.10} parent=11 // pred_check
        %p222 = pneg %p181
      $region14: #{_lambda_.10} parent=11 // pred_check_branch
        %224 = sbr.rel (%p222) target = $region16
      $region15: #{_lambda_.10} parent=11 // pred_region
        _
      $region16: #{_lambda_.10} parent=11 // pred_fallthru
        _
    $region12: #{_lambda_.10} parent=5 // pred_fallthru
      _
    %p225 = scmp.lt.s32.totalorder %s12, 40
    // Predicated region
    $region17: #{_lambda_.10} parent=5 // pred_check
      %p226 = pneg %p225
    $region18: #{_lambda_.10} parent=5 // pred_check_branch
      %228 = sbr.rel (%p226) target = $region20
    $region19: #{_lambda_.10} parent=5 // pred_region
      // Predicated region
      $region21: #{_lambda_.10} parent=19 // pred_check
        %p229 = pneg %p46
      $region22: #{_lambda_.10} parent=19 // pred_check_branch
        %231 = sbr.rel (%p229) target = $region24
      $region23: #{_lambda_.10} parent=19 // pred_region
        %p232 = scmp.lt.s32.totalorder %s19, 9
        %s233 = scalar_select %p232, %s19, 9
        %p234 = scmp.lt.s32.totalorder %s20, 3
        %s235 = scalar_select %p234, %s20, 3
        %s236 = smul.addr %s233, 4
        %s237 = sadd.s32 %s235, %s236
        %s238 = smul.addr %s237, 2
        %s239 = scalar_lea.vmem %s0, %s238
      $region24: #{_lambda_.10} parent=19 // pred_fallthru
        _
      // Predicated region
      $region25: #{_lambda_.10} parent=19 // pred_check
        %p240 = pneg %p74
      $region26: #{_lambda_.10} parent=19 // pred_check_branch
        %242 = sbr.rel (%p240) target = $region28
      $region27: #{_lambda_.10} parent=19 // pred_region
        %p243 = scmp.lt.s32.totalorder %s19, 9
        %s244 = scalar_select %p243, %s19, 9
        %p245 = scmp.lt.s32.totalorder %s20, 3
        %s246 = scalar_select %p245, %s20, 3
        %s247 = smul.addr %s244, 4
        %s248 = sadd.s32 %s246, %s247
        %s249 = smul.addr %s248, 2
        %s250 = scalar_lea.vmem %s1, %s249
      $region28: #{_lambda_.10} parent=19 // pred_fallthru
        _
      // Predicated region
      $region29: #{_lambda_.10} parent=19 // pred_check
        %p251 = pneg %p102
      $region30: #{_lambda_.10} parent=19 // pred_check_branch
        %253 = sbr.rel (%p251) target = $region32
      $region31: #{_lambda_.10} parent=19 // pred_region
        %p254 = scmp.lt.s32.totalorder %s19, 9
        %s255 = scalar_select %p254, %s19, 9
        %p256 = scmp.lt.s32.totalorder %s20, 3
        %s257 = scalar_select %p256, %s20, 3
        %s258 = smul.addr %s255, 4
        %s259 = sadd.s32 %s257, %s258
        %s260 = smul.addr %s259, 2
        %s261 = scalar_lea.vmem %s2, %s260
      $region32: #{_lambda_.10} parent=19 // pred_fallthru
        _
      // Predicated region
      $region33: #{_lambda_.10} parent=19 // pred_check
        %p262 = pneg %p128
      $region34: #{_lambda_.10} parent=19 // pred_check_branch
        %264 = sbr.rel (%p262) target = $region36
      $region35: #{_lambda_.10} parent=19 // pred_region
        %p265 = scmp.lt.s32.totalorder %s19, 9
        %s266 = scalar_select %p265, %s19, 9
        %s267 = smul.addr %s266, 2
        %s268 = scalar_lea.vmem %s3, %s267
      $region36: #{_lambda_.10} parent=19 // pred_fallthru
        _
      // Predicated region
      $region37: #{_lambda_.10} parent=19 // pred_check
        %p269 = pneg %p154
      $region38: #{_lambda_.10} parent=19 // pred_check_branch
        %271 = sbr.rel (%p269) target = $region40
      $region39: #{_lambda_.10} parent=19 // pred_region
        %p272 = scmp.lt.s32.totalorder %s20, 3
        %s273 = scalar_select %p272, %s20, 3
        %s274 = smul.addr %s273, 4
        %s275 = scalar_lea.vmem %s4, %s274
      $region40: #{_lambda_.10} parent=19 // pred_fallthru
        _
    $region20: #{_lambda_.10} parent=5 // pred_fallthru
      _
    %p276 = scmp.le.s32.totalorder 1, %s12
    %p277 = scmp.lt.s32.totalorder %s12, 41
    %p278 = pnand %p276, %p277
    %p279 = pneg %p278
    // Predicated region
    $region41: #{_lambda_.10} parent=5 // pred_check
      _
    $region42: #{_lambda_.10} parent=5 // pred_check_branch
      %281 = sbr.rel (%p278) target = $region44
    $region43: #{_lambda_.10} parent=5 // pred_region
      %s282 = ssub.s32 %s12, 1
      %p283 = scmp.lt.s32.totalorder %s21, 9
      %s284 = scalar_select %p283, %s21, 9
      %p285 = scmp.lt.s32.totalorder %s22, 3
      %s286 = scalar_select %p285, %s22, 3
      %s287 = smul.addr %s284, 4
      %s288 = sadd.s32 %s286, %s287
      %s289 = smul.addr %s288, 2
      %s290 = scalar_lea.vmem %s0, %s289
      %p291 = pneg %p52
      %p292 = pneg %p49
      %p293 = scmp.lt.s32.totalorder %s21, 9
      %s294 = scalar_select %p293, %s21, 9
      %p295 = scmp.lt.s32.totalorder %s22, 3
      %s296 = scalar_select %p295, %s22, 3
      %s297 = smul.addr %s294, 4
      %s298 = sadd.s32 %s296, %s297
      %s299 = smul.addr %s298, 2
      %s300 = scalar_lea.vmem %s1, %s299
      %p301 = pneg %p80
      %p302 = pneg %p77
      %p303 = scmp.lt.s32.totalorder %s21, 9
      %s304 = scalar_select %p303, %s21, 9
      %p305 = scmp.lt.s32.totalorder %s22, 3
      %s306 = scalar_select %p305, %s22, 3
      %s307 = smul.addr %s304, 4
      %s308 = sadd.s32 %s306, %s307
      %s309 = smul.addr %s308, 2
      %s310 = scalar_lea.vmem %s2, %s309
      %p311 = pneg %p108
      %p312 = pneg %p105
      %p313 = scmp.lt.s32.totalorder %s21, 9
      %s314 = scalar_select %p313, %s21, 9
      %s315 = smul.addr %s314, 2
      %s316 = scalar_lea.vmem %s3, %s315
      %p317 = pneg %p134
      %p318 = pneg %p131
      %p319 = scmp.lt.s32.totalorder %s22, 3
      %s320 = scalar_select %p319, %s22, 3
      %s321 = smul.addr %s320, 4
      %s322 = scalar_lea.vmem %s4, %s321
      %p323 = pneg %p160
      %p324 = pneg %p157
      %p325 = pneg %p181
      %p326 = pneg %p178
      %p327 = pneg %p207
      %p328 = pneg %p204
      %p329 = scmp.lt.s32.totalorder %s21, 9
      %s330 = scalar_select %p329, %s21, 9
      %s331 = smul.addr %s330, 2
      %s332 = scalar_lea.vmem %s6, %s331
      %p333 = scmp.lt.s32.totalorder %s21, 9
      %s334 = scalar_select %p333, %s21, 9
      %p335 = scmp.lt.s32.totalorder %s22, 3
      %s336 = scalar_select %p335, %s22, 3
      %s337 = smul.addr %s334, 4
      %s338 = sadd.s32 %s336, %s337
      %s339 = smul.addr %s338, 2
      %s340 = scalar_lea.vmem %s0, %s339
      %p341 = scmp.lt.s32.totalorder %s21, 9
      %s342 = scalar_select %p341, %s21, 9
      %p343 = scmp.lt.s32.totalorder %s22, 3
      %s344 = scalar_select %p343, %s22, 3
      %s345 = smul.addr %s342, 4
      %s346 = sadd.s32 %s344, %s345
      %s347 = smul.addr %s346, 2
      %s348 = scalar_lea.vmem %s1, %s347
      %p349 = scmp.lt.s32.totalorder %s21, 9
      %s350 = scalar_select %p349, %s21, 9
      %p351 = scmp.lt.s32.totalorder %s22, 3
      %s352 = scalar_select %p351, %s22, 3
      %s353 = smul.addr %s350, 4
      %s354 = sadd.s32 %s352, %s353
      %s355 = smul.addr %s354, 2
      %s356 = scalar_lea.vmem %s2, %s355
      %p357 = scmp.lt.s32.totalorder %s21, 9
      %s358 = scalar_select %p357, %s21, 9
      %s359 = smul.addr %s358, 2
      %s360 = scalar_lea.vmem %s3, %s359
      %p361 = scmp.lt.s32.totalorder %s22, 3
      %s362 = scalar_select %p361, %s22, 3
      %s363 = smul.addr %s362, 4
      %s364 = scalar_lea.vmem %s4, %s363
      %p365 = scmp.lt.s32.totalorder %s21, 9
      %s366 = scalar_select %p365, %s21, 9
      %s367 = smul.addr %s366, 2
      %s368 = scalar_lea.vmem %s6, %s367
      %p370 = scmp.eq.s32.totalorder %s22, 0
      // Predicated region
      $region45: #{_lambda_.10} parent=43 // pred_check
        %p371 = pneg %p370
      $region46: #{_lambda_.10} parent=43 // pred_check_branch
        %373 = sbr.rel (%p371) target = $region48
      $region47: #{_lambda_.10} parent=43 // pred_region
        %vm374 = vcmask 257024
        %375 = vst.msk [vmem:[#allocation2] sm:$0xf] %vm374, 0.0
      $region48: #{_lambda_.10} parent=43 // pred_fallthru
        _
      %v376 = vld [vmem:[%s340] sm:$0x3]
      %v377 = vld [vmem:[%s348] sm:$0x3]
      %v378 = vld [vmem:[%s356] sm:$0x3]
      %vm379 = vcmask 64512
      %v381 = vsel %vm379, %v376, 0
      %v384 = vsel %vm379, %v377, 0
      %386 = vmatprep.subr.bf16.mxu0 0
      %387 = vmatpush1.bf16.xpose.msra.mxu0 0
      %388 = vmatprep.subr.bf16.mxu0 0
      %389 = vmatpush1.bf16.xpose.msra.mxu0 0
      %390 = vmatprep.subr.bf16.mxu0 0
      %391 = vmatpush1.bf16.xpose.msra.mxu0 0
      %392 = vmatprep.subr.bf16.mxu0 0
      %393 = vmatpush1.bf16.xpose.msra.mxu0 0
      %394 = vmatprep.subr.bf16.mxu0 0
      %395 = vmatpush1.bf16.xpose.msra.mxu0 0
      %396 = vmatprep.subr.bf16.mxu0 0
      %397 = vmatpush1.bf16.xpose.msra.mxu0 0
      %398 = vmatprep.subr.bf16.mxu0 0
      %399 = vmatpush1.bf16.xpose.msra.mxu0 0
      %400 = vmatprep.subr.bf16.mxu0 0
      %401 = vmatpush1.bf16.xpose.msra.mxu0 %v384
      %402 = vmatprep.subr.bf16.mxu0 0
      %403 = vmatpush2.bf16.xpose.msra.mxu0 0
      %404 = vmatprep.subr.bf16.mxu0 0
      %405 = vmatpush2.bf16.xpose.msra.mxu0 0
      %406 = vmatprep.subr.bf16.mxu0 0
      %407 = vmatpush2.bf16.xpose.msra.mxu0 0
      %408 = vmatprep.subr.bf16.mxu0 0
      %409 = vmatpush2.bf16.xpose.msra.mxu0 0
      %410 = vmatprep.subr.bf16.mxu0 0
      %411 = vmatpush2.bf16.xpose.msra.mxu0 0
      %412 = vmatprep.subr.bf16.mxu0 0
      %413 = vmatpush2.bf16.xpose.msra.mxu0 0
      %414 = vmatprep.subr.bf16.mxu0 0
      %415 = vmatpush2.bf16.xpose.msra.mxu0 0
      %416 = vmatprep.subr.bf16.mxu0 0
      %417 = vmatpush2.bf16.xpose.msra.mxu0 0
      %418 = vmatprep.mubr.bf16.mxu0 0
      %419 = vmatmul.mubr.bf16.gmra.mxu0 %v381
      %v420 = vpop.f32.mrf.mxu0
      %v421 = vadd.f32 0.0, %v420
      %v422 = vpop.f32.mrf.mxu0
      %v423 = vpop.f32.mrf.mxu0
      %v424 = vpop.f32.mrf.mxu0
      %425 = vdwg.mxu0
      %v426 = vmul.f32 %v421, 0.35355338
      %vm427 = vcmask 27648
      %v428 = vsel %vm427, %v426, -inf
      %429 = vmax.xlane.f32.xlu0 %v428
      %v430 = vpop.xlane.xlu0 %429
      %v431 = vsub.f32 %v426, %v430
      %v432 = vmul.f32 %v431, 1.442695
      %v433 = vpow.pop %v432
      %v434 = vsel %vm427, %v433, 0.0
      %435 = vadd.xlane.f32.xlu0 %v434
      %v436 = vpop.xlane.xlu0 %435
      %v437 = vrcp.pop %v436
      %v438 = vmul.f32 %v433, %v437
      %v439 = vpack.c.bf16 %v438, %v438
      %vm440 = vcmask 31744
      %v442 = vsel %vm440, %v439, 0
      %vm444 = vcmask 1041408
      %v446 = vsel %vm444, %v378, 0
      %448 = vmatprep.subr.bf16.mxu0 0
      %449 = vmatpush1.bf16.msra.mxu0 0
      %450 = vmatprep.subr.bf16.mxu0 0
      %451 = vmatpush1.bf16.msra.mxu0 0
      %452 = vmatprep.subr.bf16.mxu0 0
      %453 = vmatpush1.bf16.msra.mxu0 0
      %454 = vmatprep.subr.bf16.mxu0 0
      %455 = vmatpush1.bf16.msra.mxu0 0
      %456 = vmatprep.subr.bf16.mxu0 0
      %457 = vmatpush1.bf16.msra.mxu0 0
      %458 = vmatprep.subr.bf16.mxu0 0
      %459 = vmatpush1.bf16.msra.mxu0 0
      %460 = vmatprep.subr.bf16.mxu0 0
      %461 = vmatpush1.bf16.msra.mxu0 0
      %462 = vmatprep.subr.bf16.mxu0 0
      %463 = vmatpush1.bf16.msra.mxu0 %v446
      %464 = vmatprep.subr.bf16.mxu0 0
      %465 = vmatpush2.bf16.msra.mxu0 0
      %466 = vmatprep.subr.bf16.mxu0 0
      %467 = vmatpush2.bf16.msra.mxu0 0
      %468 = vmatprep.subr.bf16.mxu0 0
      %469 = vmatpush2.bf16.msra.mxu0 0
      %470 = vmatprep.subr.bf16.mxu0 0
      %471 = vmatpush2.bf16.msra.mxu0 0
      %472 = vmatprep.subr.bf16.mxu0 0
      %473 = vmatpush2.bf16.msra.mxu0 0
      %474 = vmatprep.subr.bf16.mxu0 0
      %475 = vmatpush2.bf16.msra.mxu0 0
      %476 = vmatprep.subr.bf16.mxu0 0
      %477 = vmatpush2.bf16.msra.mxu0 0
      %478 = vmatprep.subr.bf16.mxu0 0
      %479 = vmatpush2.bf16.msra.mxu0 0
      %480 = vmatprep.mubr.bf16.mxu0 0
      %481 = vmatmul.mubr.bf16.gmra.mxu0 %v442
      %v482 = vpop.f32.mrf.mxu0
      %v483 = vadd.f32 0.0, %v482
      %v484 = vpop.f32.mrf.mxu0
      %v485 = vpop.f32.mrf.mxu0
      %v486 = vpop.f32.mrf.mxu0
      %487 = vdwg.mxu0
      %v488 = vld [vmem:[#allocation2] sm:$0xf]
      %v489 = vpack.c.bf16 %v483, %v483
      %v490 = vld [vmem:[%s364] sm:$0xf]
      %v492 = vsel %vm379, %v489, 0
      %vm494 = vcmask 1043456
      %v496 = vsel %vm494, %v490, 0
      %498 = vmatprep.subr.bf16.mxu0 0
      %499 = vmatpush1.bf16.msra.mxu0 0
      %500 = vmatprep.subr.bf16.mxu0 0
      %501 = vmatpush1.bf16.msra.mxu0 0
      %502 = vmatprep.subr.bf16.mxu0 0
      %503 = vmatpush1.bf16.msra.mxu0 0
      %504 = vmatprep.subr.bf16.mxu0 0
      %505 = vmatpush1.bf16.msra.mxu0 0
      %506 = vmatprep.subr.bf16.mxu0 0
      %507 = vmatpush1.bf16.msra.mxu0 0
      %508 = vmatprep.subr.bf16.mxu0 0
      %509 = vmatpush1.bf16.msra.mxu0 0
      %510 = vmatprep.subr.bf16.mxu0 0
      %511 = vmatpush1.bf16.msra.mxu0 0
      %512 = vmatprep.subr.bf16.mxu0 0
      %513 = vmatpush1.bf16.msra.mxu0 %v496
      %514 = vmatprep.subr.bf16.mxu0 0
      %515 = vmatpush2.bf16.msra.mxu0 0
      %516 = vmatprep.subr.bf16.mxu0 0
      %517 = vmatpush2.bf16.msra.mxu0 0
      %518 = vmatprep.subr.bf16.mxu0 0
      %519 = vmatpush2.bf16.msra.mxu0 0
      %520 = vmatprep.subr.bf16.mxu0 0
      %521 = vmatpush2.bf16.msra.mxu0 0
      %522 = vmatprep.subr.bf16.mxu0 0
      %523 = vmatpush2.bf16.msra.mxu0 0
      %524 = vmatprep.subr.bf16.mxu0 0
      %525 = vmatpush2.bf16.msra.mxu0 0
      %526 = vmatprep.subr.bf16.mxu0 0
      %527 = vmatpush2.bf16.msra.mxu0 0
      %528 = vmatprep.subr.bf16.mxu0 0
      %529 = vmatpush2.bf16.msra.mxu0 0
      %530 = vmatprep.mubr.bf16.mxu0 0
      %531 = vmatmul.mubr.bf16.gmra.mxu0 %v492
      %v532 = vpop.f32.mrf.mxu0
      %v533 = vadd.f32 0.0, %v532
      %v534 = vpop.f32.mrf.mxu0
      %v535 = vpop.f32.mrf.mxu0
      %v536 = vpop.f32.mrf.mxu0
      %537 = vdwg.mxu0
      %v538 = vadd.f32 %v488, %v533
      %vm539 = vcmask 257024
      %540 = vst.msk [vmem:[#allocation2] sm:$0xf] %vm539, %v538
      %p541 = scmp.eq.s32.totalorder %s22, 3
      // Predicated region
      $region49: #{_lambda_.10} parent=43 // pred_check
        %p542 = pneg %p541
      $region50: #{_lambda_.10} parent=43 // pred_check_branch
        %544 = sbr.rel (%p542) target = $region52
      $region51: #{_lambda_.10} parent=43 // pred_region
        %v545 = vld [vmem:[#allocation2] sm:$0xf]
        %v546 = vld [vmem:[%s5] sm:$0x1]
        %v548 = vlaneseq
        %v549 = vshrl.u32 %v548, 7
        %v550 = vsub.s32 0, %v549
        %v551 = vrot.slane %v546, %v550
        %v553 = vadd.f32 %v545, %v551
        %v554 = vld [vmem:[%s360] sm:$0x3]
        %v555 = vunpack.c.l.bf16 %v554
        %v556 = vadd.f32 %v553, %v555
        %v557 = vpack.c.bf16 %v556, %v556
        %vm558 = vcmask 254976
        %559 = vst.msk [vmem:[%s368] sm:$0x3] %vm558, %v557
      $region52: #{_lambda_.10} parent=43 // pred_fallthru
        _
      %p560 = scmp.lt.s32.totalorder %s21, 9
      %s561 = scalar_select %p560, %s21, 9
      %s562 = smul.addr %s561, 2
      %s563 = scalar_lea.vmem %s6, %s562
      // Predicated region
      $region53: #{_lambda_.10} parent=43 // pred_check
        %p564 = pneg %p204
      $region54: #{_lambda_.10} parent=43 // pred_check_branch
        %566 = sbr.rel (%p564) target = $region56
      $region55: #{_lambda_.10} parent=43 // pred_region
        _
      $region56: #{_lambda_.10} parent=43 // pred_fallthru
        _
    $region44: #{_lambda_.10} parent=5 // pred_fallthru
      _
    %p567 = scmp.le.s32.totalorder 2, %s12
    // Predicated region
    $region57: #{_lambda_.10} parent=5 // pred_check
      %p568 = pneg %p567
    $region58: #{_lambda_.10} parent=5 // pred_check_branch
      %570 = sbr.rel (%p568) target = $region60
    $region59: #{_lambda_.10} parent=5 // pred_region
      %s571 = ssub.s32 %s12, 2
      // Predicated region
      $region61: #{_lambda_.10} parent=59 // pred_check
        %p572 = pneg %p210
      $region62: #{_lambda_.10} parent=59 // pred_check_branch
        %574 = sbr.rel (%p572) target = $region64
      $region63: #{_lambda_.10} parent=59 // pred_region
        %p575 = scmp.lt.s32.totalorder %s23, 9
        %s576 = scalar_select %p575, %s23, 9
        %s577 = smul.addr %s576, 2
        %s578 = scalar_lea.vmem %s6, %s577
      $region64: #{_lambda_.10} parent=59 // pred_fallthru
        _
    $region60: #{_lambda_.10} parent=5 // pred_fallthru
      _
  $region6: #{_lambda_.10} parent=0 // loop_footer
    %s16 = sadd.s32 1, %s12
  $region7: #{_lambda_.10} parent=0 // loop_footer_branch
    %11 = sbr.rel target = $region3
  $region8: #{_lambda_.10} parent=0 // loop_exit
    _

</llo_original>
